<compile_context>
chip_gen: v7x
topology: tpu7x:2x2x1
jax: 0.10.0
libtpu: 0.0.40
codegen_flags: <defaults>
</compile_context>

<pallas_src>
import functools

import jax
import jax.numpy as jnp
import numpy as np
from jax import lax
from jax.experimental import pallas as pl
from jax.experimental.pallas import tpu as pltpu

RHO = 0.5          # rho of data_consistency / myAtA (static, baked into kernel)
CG_ITERS = 10
CG_TOL = 1e-10


def _round_up(x, m):
    return (x + m - 1) // m * m


def _cg_loop(AtA, rhs):
    """Fixed-trip, fully unrolled CG with scalar-guarded early stop."""
    x0 = jnp.zeros_like(rhs)
    rTr0 = jnp.sum(rhs * rhs, keepdims=True)                      # (1, 1) f32

    def body(_, carry):
        x, r, p, rTr = carry
        active = rTr > CG_TOL                                     # (1, 1) bool
        Ap = AtA(p)                                               # (Bp, Np) f32
        pAp = jnp.sum(p * Ap, keepdims=True)                      # (1, 1)
        # Scalar (1,1) guards emulate the reference early stop (rTr <= 1e-10):
        # alpha = beta = 0 freezes x and r, and guards 1/pAp, 1/rTr.
        alpha = jnp.where(active, rTr * pl.reciprocal(pAp, approx=True), 0.0)
        x = x + alpha * p
        r = r - alpha * Ap
        rTr_new = jnp.sum(r * r, keepdims=True)
        beta = jnp.where(active, rTr_new * pl.reciprocal(rTr, approx=True), 0.0)
        p = r + beta * p
        rTr = jnp.where(active, rTr_new, rTr)
        return x, r, p, rTr

    x, _, _, _ = lax.fori_loop(0, CG_ITERS, body, (x0, rhs, rhs, rTr0),
                               unroll=True)
    return x


def _dc_cg_direct_kernel(a_ref, rec_ref, z_ref, out_ref, *, fbp_scale):
    """Direct operator form: Ap = ((p @ A^T) @ A)*fbp_scale + rho*p."""
    a = a_ref[...]                                   # (Dp, Np) bf16
    rhs = rec_ref[...] + RHO * z_ref[...]            # (Bp, Np) f32

    def AtA(p):
        sino = lax.dot_general(p.astype(jnp.bfloat16), a,
                               (((1,), (1,)), ((), ())),
                               preferred_element_type=jnp.float32)   # (Bp, Dp)
        back = lax.dot_general(sino.astype(jnp.bfloat16), a,
                               (((1,), (0,)), ((), ())),
                               preferred_element_type=jnp.float32)   # (Bp, Np)
        return back * fbp_scale + RHO * p            # f32 epilogue (rho*p in f32)

    out_ref[...] = _cg_loop(AtA, rhs)


def _dc_cg_gram_kernel(a_ref, rec_ref, z_ref, out_ref, *, fbp_scale):
    """Gram operator form: one-time G = A^T A (bf16), Ap = (p@G)*s + rho*p."""
    a = a_ref[...]                                   # (Dp, Np) bf16
    # One-time Gram; fbp scale and rho*I stay in the f32 per-iteration epilogue
    # (no identity materialization, no N^2 scale pass).
    gram_bf16 = lax.dot_general(a, a, (((0,), (0,)), ((), ())),
                                preferred_element_type=jnp.float32
                                ).astype(jnp.bfloat16)              # (Np, Np)

    rhs = rec_ref[...] + RHO * z_ref[...]            # (Bp, Np) f32

    def AtA(p):
        gp = lax.dot_general(p.astype(jnp.bfloat16), gram_bf16,
                             (((1,), (0,)), ((), ())),
                             preferred_element_type=jnp.float32)     # (Bp, Np)
        return gp * fbp_scale + RHO * p

    out_ref[...] = _cg_loop(AtA, rhs)


def _vmem_cap_bytes():
    """Per-generation VMEM cap (leave headroom for compiler temporaries)."""
    try:
        info = pltpu.get_tpu_info()
        cap = getattr(info, "vmem_capacity_bytes", None)
        if cap:
            return int(cap) * 3 // 4      # ~96 MiB on v5e/v6e, ~48 MiB on v7x
    except Exception:
        pass
    return 48 << 20


def data_consistency_forward(rec, z, a, use_gram=None):
    """rec, z: (B, C, H, W) float32; a: (D, N=C*H*W) float32 system matrix."""
    B, C, H, W = rec.shape
    N = C * H * W
    D = a.shape[0]
    assert a.shape == (D, N)
    fbp_scale = 1.0 / D          # physics.fbp normalization uses the ORIGINAL D

    # TPU-friendly zero padding (exact — padded rows/cols stay zero through CG
    # and contribute nothing to the batch-summed rTr / alpha / beta).
    Bp = _round_up(B, 16)         # bf16 LHS sublane tile
    Np = _round_up(N, 128)        # lane-dense vectors
    Dp = _round_up(D, 128)        # lane-dense sinogram dim

    rec2 = jnp.zeros((Bp, Np), jnp.float32)
    rec2 = rec2.at[:B, :N].set(rec.reshape(B, N).astype(jnp.float32))
    z2 = jnp.zeros((Bp, Np), jnp.float32)
    z2 = z2.at[:B, :N].set(z.reshape(B, N).astype(jnp.float32))
    a2 = jnp.zeros((Dp, Np), jnp.bfloat16)
    a2 = a2.at[:D, :N].set(a.astype(jnp.bfloat16))

    vmem_cap = _vmem_cap_bytes()

    a_bytes = Dp * Np * 2
    vec_bytes = Bp * Np * 4
    gram_bytes = Np * Np * 6          # transient f32 build + resident bf16 G

    if use_gram is None:
        # MXU cost: Gram build + 10 NxN matvecs vs 10 x two (N,D) matmuls.
        mxu_gram = Np * Np * Dp + CG_ITERS * Bp * Np * Np
        mxu_direct = CG_ITERS * 2 * Bp * Np * Dp
        gram_need = 2 * (a_bytes + 3 * vec_bytes) + 10 * vec_bytes \
            + gram_bytes + (4 << 20)
        use_gram = (mxu_gram < mxu_direct) and (gram_need <= vmem_cap)

    # Size-derived VMEM budget: in/out blocks (worst-case double buffers) +
    # CG state/temps (+ Gram if used) + headroom; capped per generation.
    need = 2 * (a_bytes + 3 * vec_bytes) + 10 * vec_bytes + (4 << 20)
    if use_gram:
        need += gram_bytes
    vmem_limit = int(min(max(need, 16 << 20), vmem_cap))

    kern = _dc_cg_gram_kernel if use_gram else _dc_cg_direct_kernel
    kernel = functools.partial(kern, fbp_scale=fbp_scale)
    out = pl.pallas_call(
        kernel,
        out_shape=jax.ShapeDtypeStruct((Bp, Np), jnp.float32),
        in_specs=[
            pl.BlockSpec((Dp, Np), lambda: (0, 0)),
            pl.BlockSpec((Bp, Np), lambda: (0, 0)),
            pl.BlockSpec((Bp, Np), lambda: (0, 0)),
        ],
        out_specs=pl.BlockSpec((Bp, Np), lambda: (0, 0)),
        compiler_params=pltpu.CompilerParams(vmem_limit_bytes=vmem_limit),
    )(a2, rec2, z2)

    return out[:B, :N].reshape(B, C, H, W)


def reference_forward(rec, z, a):
    """Pure numpy (float64) reference matching the PyTorch module exactly."""
    rec = np.asarray(rec, np.float64)
    z = np.asarray(z, np.float64)
    a = np.asarray(a, np.float64)
    B, C, H, W = rec.shape
    N = C * H * W
    rec2 = rec.reshape(B, N)
    z2 = z.reshape(B, N)
    rhs = rec2 + RHO * z2
    scale = 1.0 / a.shape[0]

    def AtA(p):
        return (p @ a.T) @ a * scale + RHO * p

    x = np.zeros_like(rhs)
    r = rhs.copy()
    p = rhs.copy()
    rTr = np.sum(r * r)
    i = 0
    while i < CG_ITERS and rTr > CG_TOL:
        Ap = AtA(p)
        alpha = rTr / np.sum(p * Ap)
        x = x + alpha * p
        r = r - alpha * Ap
        rTrNew = np.sum(r * r)
        beta = rTrNew / rTr
        p = r + beta * p
        i += 1
        rTr = rTrNew
    return x.reshape(B, C, H, W)


if __name__ == "__main__":
    B, C, H, W = 2, 1, 16, 16
    N = C * H * W          # 256
    D = 128                # synthetic number of detector bins

    key = jax.random.PRNGKey(0)
    k_a, k_rec, k_z = jax.random.split(key, 3)

    # Deterministic synthetic "physics" system matrix (small scale -> well conditioned).
    a = 0.1 * jax.random.normal(k_a, (D, N), dtype=jnp.float32)
    rec = jax.random.normal(k_rec, (B, C, H, W), dtype=jnp.float32)
    z = jax.random.normal(k_z, (B, C, H, W), dtype=jnp.float32)

    ref = reference_forward(rec, z, a)

    # Auto dispatch (direct operator form wins at this shape: small B, N > D).
    out = jax.block_until_ready(data_consistency_forward(rec, z, a))
    if not np.allclose(np.asarray(out), ref, rtol=2e-2, atol=2e-2):
        raise AssertionError("direct-form Pallas kernel does not match reference")

    # Also exercise the Gram-precompute path (auto-picked for large stacked
    # batch / small N regimes).
    out_g = jax.block_until_ready(
        data_consistency_forward(rec, z, a, use_gram=True))
    if not np.allclose(np.asarray(out_g), ref, rtol=2e-2, atol=2e-2):
        raise AssertionError("gram-form Pallas kernel does not match reference")

    print("KERNEL_OK")
</pallas_src>

<mosaic_0001>
module attributes {stable_mosaic.version = 11 : i64} {
  func.func @_dc_cg_direct_kernel(%arg0: memref<128x256xbf16, #tpu.memory_space<vmem>>, %arg1: memref<16x256xf32, #tpu.memory_space<vmem>>, %arg2: memref<16x256xf32, #tpu.memory_space<vmem>>, %arg3: memref<16x256xf32, #tpu.memory_space<vmem>>) attributes {dimension_semantics = [], scalar_prefetch = 0 : i64, scratch_operands = 0 : i64, tpu.core_type = #tpu.core_type<tc>} {
    %c0 = arith.constant 0 : index
    %c0_0 = arith.constant 0 : index
    %0 = vector.load %arg0[%c0, %c0_0] : memref<128x256xbf16, #tpu.memory_space<vmem>>, vector<128x256xbf16>
    %c0_1 = arith.constant 0 : index
    %c0_2 = arith.constant 0 : index
    %1 = vector.load %arg1[%c0_1, %c0_2] : memref<16x256xf32, #tpu.memory_space<vmem>>, vector<16x256xf32>
    %c0_3 = arith.constant 0 : index
    %c0_4 = arith.constant 0 : index
    %2 = vector.load %arg2[%c0_3, %c0_4] : memref<16x256xf32, #tpu.memory_space<vmem>>, vector<16x256xf32>
    %cst = arith.constant 5.000000e-01 : f32
    %3 = vector.broadcast %cst : f32 to vector<16x256xf32>
    %4 = arith.mulf %3, %2 : vector<16x256xf32>
    %5 = arith.addf %1, %4 : vector<16x256xf32>
    %cst_5 = arith.constant 0.000000e+00 : f32
    %6 = vector.broadcast %cst_5 : f32 to vector<16x256xf32>
    %7 = arith.mulf %5, %5 : vector<16x256xf32>
    %8 = vector.shape_cast %7 : vector<16x256xf32> to vector<1x16x256xf32>
    %cst_6 = arith.constant dense<0.000000e+00> : vector<1xf32>
    %9 = vector.multi_reduction <add>, %8, %cst_6 [1, 2] : vector<1x16x256xf32> to vector<1xf32>
    %10 = vector.shape_cast %9 : vector<1xf32> to vector<1x1x1xf32>
    %11 = vector.extract %10[0, 0, 0] : f32 from vector<1x1x1xf32>
    %12 = vector.broadcast %11 : f32 to vector<1x1xf32>
    %c0_i32 = arith.constant 0 : i32
    %cst_7 = arith.constant 1.000000e-10 : f32
    %13 = vector.broadcast %cst_7 : f32 to vector<1x1xf32>
    %14 = arith.cmpf ogt, %12, %13 : vector<1x1xf32>
    %15 = arith.truncf %5 : vector<16x256xf32> to vector<16x256xbf16>
    %cst_8 = arith.constant dense<0.000000e+00> : vector<16x128xf32>
    %16 = tpu.matmul %15, %0, %cst_8 {dimension_numbers = #tpu.dot_dimension_numbers<[1], [1], [0], [0], [0, 0, 1, 0], [], []>} : vector<16x256xbf16>, vector<128x256xbf16>, vector<16x128xf32> -> vector<16x128xf32>
    %17 = arith.truncf %16 : vector<16x128xf32> to vector<16x128xbf16>
    %cst_9 = arith.constant dense<0.000000e+00> : vector<16x256xf32>
    %18 = tpu.matmul %17, %0, %cst_9 {dimension_numbers = #tpu.dot_dimension_numbers<[1], [0], [0], [1], [0, 0, 1, 1], [], []>} : vector<16x128xbf16>, vector<128x256xbf16>, vector<16x256xf32> -> vector<16x256xf32>
    %cst_10 = arith.constant 7.812500e-03 : f32
    %19 = vector.broadcast %cst_10 : f32 to vector<16x256xf32>
    %20 = arith.mulf %18, %19 : vector<16x256xf32>
    %cst_11 = arith.constant 5.000000e-01 : f32
    %21 = vector.broadcast %cst_11 : f32 to vector<16x256xf32>
    %22 = arith.mulf %21, %5 : vector<16x256xf32>
    %23 = arith.addf %20, %22 : vector<16x256xf32>
    %24 = arith.mulf %5, %23 : vector<16x256xf32>
    %25 = vector.shape_cast %24 : vector<16x256xf32> to vector<1x16x256xf32>
    %cst_12 = arith.constant dense<0.000000e+00> : vector<1xf32>
    %26 = vector.multi_reduction <add>, %25, %cst_12 [1, 2] : vector<1x16x256xf32> to vector<1xf32>
    %27 = vector.shape_cast %26 : vector<1xf32> to vector<1x1x1xf32>
    %28 = vector.extract %27[0, 0, 0] : f32 from vector<1x1x1xf32>
    %29 = vector.broadcast %28 : f32 to vector<1x1xf32>
    %30 = tpu.reciprocal %29 {approx = true} : vector<1x1xf32> -> vector<1x1xf32>
    %31 = arith.mulf %12, %30 : vector<1x1xf32>
    %cst_13 = arith.constant 0.000000e+00 : f32
    %32 = vector.broadcast %cst_13 : f32 to vector<1x1xf32>
    %33 = arith.select %14, %31, %32 : vector<1x1xi1>, vector<1x1xf32>
    %34 = vector.broadcast %33 : vector<1x1xf32> to vector<16x256xf32>
    %35 = arith.mulf %34, %5 : vector<16x256xf32>
    %36 = arith.addf %6, %35 : vector<16x256xf32>
    %37 = vector.broadcast %33 : vector<1x1xf32> to vector<16x256xf32>
    %38 = arith.mulf %37, %23 : vector<16x256xf32>
    %39 = arith.subf %5, %38 : vector<16x256xf32>
    %40 = arith.mulf %39, %39 : vector<16x256xf32>
    %41 = vector.shape_cast %40 : vector<16x256xf32> to vector<1x16x256xf32>
    %cst_14 = arith.constant dense<0.000000e+00> : vector<1xf32>
    %42 = vector.multi_reduction <add>, %41, %cst_14 [1, 2] : vector<1x16x256xf32> to vector<1xf32>
    %43 = vector.shape_cast %42 : vector<1xf32> to vector<1x1x1xf32>
    %44 = vector.extract %43[0, 0, 0] : f32 from vector<1x1x1xf32>
    %45 = vector.broadcast %44 : f32 to vector<1x1xf32>
    %46 = tpu.reciprocal %12 {approx = true} : vector<1x1xf32> -> vector<1x1xf32>
    %47 = arith.mulf %45, %46 : vector<1x1xf32>
    %cst_15 = arith.constant 0.000000e+00 : f32
    %48 = vector.broadcast %cst_15 : f32 to vector<1x1xf32>
    %49 = arith.select %14, %47, %48 : vector<1x1xi1>, vector<1x1xf32>
    %50 = vector.broadcast %49 : vector<1x1xf32> to vector<16x256xf32>
    %51 = arith.mulf %50, %5 : vector<16x256xf32>
    %52 = arith.addf %39, %51 : vector<16x256xf32>
    %53 = arith.select %14, %45, %12 : vector<1x1xi1>, vector<1x1xf32>
    %c1_i32 = arith.constant 1 : i32
    %cst_16 = arith.constant 1.000000e-10 : f32
    %54 = vector.broadcast %cst_16 : f32 to vector<1x1xf32>
    %55 = arith.cmpf ogt, %53, %54 : vector<1x1xf32>
    %56 = arith.truncf %52 : vector<16x256xf32> to vector<16x256xbf16>
    %cst_17 = arith.constant dense<0.000000e+00> : vector<16x128xf32>
    %57 = tpu.matmul %56, %0, %cst_17 {dimension_numbers = #tpu.dot_dimension_numbers<[1], [1], [0], [0], [0, 0, 1, 0], [], []>} : vector<16x256xbf16>, vector<128x256xbf16>, vector<16x128xf32> -> vector<16x128xf32>
    %58 = arith.truncf %57 : vector<16x128xf32> to vector<16x128xbf16>
    %cst_18 = arith.constant dense<0.000000e+00> : vector<16x256xf32>
    %59 = tpu.matmul %58, %0, %cst_18 {dimension_numbers = #tpu.dot_dimension_numbers<[1], [0], [0], [1], [0, 0, 1, 1], [], []>} : vector<16x128xbf16>, vector<128x256xbf16>, vector<16x256xf32> -> vector<16x256xf32>
    %cst_19 = arith.constant 7.812500e-03 : f32
    %60 = vector.broadcast %cst_19 : f32 to vector<16x256xf32>
    %61 = arith.mulf %59, %60 : vector<16x256xf32>
    %cst_20 = arith.constant 5.000000e-01 : f32
    %62 = vector.broadcast %cst_20 : f32 to vector<16x256xf32>
    %63 = arith.mulf %62, %52 : vector<16x256xf32>
    %64 = arith.addf %61, %63 : vector<16x256xf32>
    %65 = arith.mulf %52, %64 : vector<16x256xf32>
    %66 = vector.shape_cast %65 : vector<16x256xf32> to vector<1x16x256xf32>
    %cst_21 = arith.constant dense<0.000000e+00> : vector<1xf32>
    %67 = vector.multi_reduction <add>, %66, %cst_21 [1, 2] : vector<1x16x256xf32> to vector<1xf32>
    %68 = vector.shape_cast %67 : vector<1xf32> to vector<1x1x1xf32>
    %69 = vector.extract %68[0, 0, 0] : f32 from vector<1x1x1xf32>
    %70 = vector.broadcast %69 : f32 to vector<1x1xf32>
    %71 = tpu.reciprocal %70 {approx = true} : vector<1x1xf32> -> vector<1x1xf32>
    %72 = arith.mulf %53, %71 : vector<1x1xf32>
    %cst_22 = arith.constant 0.000000e+00 : f32
    %73 = vector.broadcast %cst_22 : f32 to vector<1x1xf32>
    %74 = arith.select %55, %72, %73 : vector<1x1xi1>, vector<1x1xf32>
    %75 = vector.broadcast %74 : vector<1x1xf32> to vector<16x256xf32>
    %76 = arith.mulf %75, %52 : vector<16x256xf32>
    %77 = arith.addf %36, %76 : vector<16x256xf32>
    %78 = vector.broadcast %74 : vector<1x1xf32> to vector<16x256xf32>
    %79 = arith.mulf %78, %64 : vector<16x256xf32>
    %80 = arith.subf %39, %79 : vector<16x256xf32>
    %81 = arith.mulf %80, %80 : vector<16x256xf32>
    %82 = vector.shape_cast %81 : vector<16x256xf32> to vector<1x16x256xf32>
    %cst_23 = arith.constant dense<0.000000e+00> : vector<1xf32>
    %83 = vector.multi_reduction <add>, %82, %cst_23 [1, 2] : vector<1x16x256xf32> to vector<1xf32>
    %84 = vector.shape_cast %83 : vector<1xf32> to vector<1x1x1xf32>
    %85 = vector.extract %84[0, 0, 0] : f32 from vector<1x1x1xf32>
    %86 = vector.broadcast %85 : f32 to vector<1x1xf32>
    %87 = tpu.reciprocal %53 {approx = true} : vector<1x1xf32> -> vector<1x1xf32>
    %88 = arith.mulf %86, %87 : vector<1x1xf32>
    %cst_24 = arith.constant 0.000000e+00 : f32
    %89 = vector.broadcast %cst_24 : f32 to vector<1x1xf32>
    %90 = arith.select %55, %88, %89 : vector<1x1xi1>, vector<1x1xf32>
    %91 = vector.broadcast %90 : vector<1x1xf32> to vector<16x256xf32>
    %92 = arith.mulf %91, %52 : vector<16x256xf32>
    %93 = arith.addf %80, %92 : vector<16x256xf32>
    %94 = arith.select %55, %86, %53 : vector<1x1xi1>, vector<1x1xf32>
    %c2_i32 = arith.constant 2 : i32
    %cst_25 = arith.constant 1.000000e-10 : f32
    %95 = vector.broadcast %cst_25 : f32 to vector<1x1xf32>
    %96 = arith.cmpf ogt, %94, %95 : vector<1x1xf32>
    %97 = arith.truncf %93 : vector<16x256xf32> to vector<16x256xbf16>
    %cst_26 = arith.constant dense<0.000000e+00> : vector<16x128xf32>
    %98 = tpu.matmul %97, %0, %cst_26 {dimension_numbers = #tpu.dot_dimension_numbers<[1], [1], [0], [0], [0, 0, 1, 0], [], []>} : vector<16x256xbf16>, vector<128x256xbf16>, vector<16x128xf32> -> vector<16x128xf32>
    %99 = arith.truncf %98 : vector<16x128xf32> to vector<16x128xbf16>
    %cst_27 = arith.constant dense<0.000000e+00> : vector<16x256xf32>
    %100 = tpu.matmul %99, %0, %cst_27 {dimension_numbers = #tpu.dot_dimension_numbers<[1], [0], [0], [1], [0, 0, 1, 1], [], []>} : vector<16x128xbf16>, vector<128x256xbf16>, vector<16x256xf32> -> vector<16x256xf32>
    %cst_28 = arith.constant 7.812500e-03 : f32
    %101 = vector.broadcast %cst_28 : f32 to vector<16x256xf32>
    %102 = arith.mulf %100, %101 : vector<16x256xf32>
    %cst_29 = arith.constant 5.000000e-01 : f32
    %103 = vector.broadcast %cst_29 : f32 to vector<16x256xf32>
    %104 = arith.mulf %103, %93 : vector<16x256xf32>
    %105 = arith.addf %102, %104 : vector<16x256xf32>
    %106 = arith.mulf %93, %105 : vector<16x256xf32>
    %107 = vector.shape_cast %106 : vector<16x256xf32> to vector<1x16x256xf32>
    %cst_30 = arith.constant dense<0.000000e+00> : vector<1xf32>
    %108 = vector.multi_reduction <add>, %107, %cst_30 [1, 2] : vector<1x16x256xf32> to vector<1xf32>
    %109 = vector.shape_cast %108 : vector<1xf32> to vector<1x1x1xf32>
    %110 = vector.extract %109[0, 0, 0] : f32 from vector<1x1x1xf32>
    %111 = vector.broadcast %110 : f32 to vector<1x1xf32>
    %112 = tpu.reciprocal %111 {approx = true} : vector<1x1xf32> -> vector<1x1xf32>
    %113 = arith.mulf %94, %112 : vector<1x1xf32>
    %cst_31 = arith.constant 0.000000e+00 : f32
    %114 = vector.broadcast %cst_31 : f32 to vector<1x1xf32>
    %115 = arith.select %96, %113, %114 : vector<1x1xi1>, vector<1x1xf32>
    %116 = vector.broadcast %115 : vector<1x1xf32> to vector<16x256xf32>
    %117 = arith.mulf %116, %93 : vector<16x256xf32>
    %118 = arith.addf %77, %117 : vector<16x256xf32>
    %119 = vector.broadcast %115 : vector<1x1xf32> to vector<16x256xf32>
    %120 = arith.mulf %119, %105 : vector<16x256xf32>
    %121 = arith.subf %80, %120 : vector<16x256xf32>
    %122 = arith.mulf %121, %121 : vector<16x256xf32>
    %123 = vector.shape_cast %122 : vector<16x256xf32> to vector<1x16x256xf32>
    %cst_32 = arith.constant dense<0.000000e+00> : vector<1xf32>
    %124 = vector.multi_reduction <add>, %123, %cst_32 [1, 2] : vector<1x16x256xf32> to vector<1xf32>
    %125 = vector.shape_cast %124 : vector<1xf32> to vector<1x1x1xf32>
    %126 = vector.extract %125[0, 0, 0] : f32 from vector<1x1x1xf32>
    %127 = vector.broadcast %126 : f32 to vector<1x1xf32>
    %128 = tpu.reciprocal %94 {approx = true} : vector<1x1xf32> -> vector<1x1xf32>
    %129 = arith.mulf %127, %128 : vector<1x1xf32>
    %cst_33 = arith.constant 0.000000e+00 : f32
    %130 = vector.broadcast %cst_33 : f32 to vector<1x1xf32>
    %131 = arith.select %96, %129, %130 : vector<1x1xi1>, vector<1x1xf32>
    %132 = vector.broadcast %131 : vector<1x1xf32> to vector<16x256xf32>
    %133 = arith.mulf %132, %93 : vector<16x256xf32>
    %134 = arith.addf %121, %133 : vector<16x256xf32>
    %135 = arith.select %96, %127, %94 : vector<1x1xi1>, vector<1x1xf32>
    %c3_i32 = arith.constant 3 : i32
    %cst_34 = arith.constant 1.000000e-10 : f32
    %136 = vector.broadcast %cst_34 : f32 to vector<1x1xf32>
    %137 = arith.cmpf ogt, %135, %136 : vector<1x1xf32>
    %138 = arith.truncf %134 : vector<16x256xf32> to vector<16x256xbf16>
    %cst_35 = arith.constant dense<0.000000e+00> : vector<16x128xf32>
    %139 = tpu.matmul %138, %0, %cst_35 {dimension_numbers = #tpu.dot_dimension_numbers<[1], [1], [0], [0], [0, 0, 1, 0], [], []>} : vector<16x256xbf16>, vector<128x256xbf16>, vector<16x128xf32> -> vector<16x128xf32>
    %140 = arith.truncf %139 : vector<16x128xf32> to vector<16x128xbf16>
    %cst_36 = arith.constant dense<0.000000e+00> : vector<16x256xf32>
    %141 = tpu.matmul %140, %0, %cst_36 {dimension_numbers = #tpu.dot_dimension_numbers<[1], [0], [0], [1], [0, 0, 1, 1], [], []>} : vector<16x128xbf16>, vector<128x256xbf16>, vector<16x256xf32> -> vector<16x256xf32>
    %cst_37 = arith.constant 7.812500e-03 : f32
    %142 = vector.broadcast %cst_37 : f32 to vector<16x256xf32>
    %143 = arith.mulf %141, %142 : vector<16x256xf32>
    %cst_38 = arith.constant 5.000000e-01 : f32
    %144 = vector.broadcast %cst_38 : f32 to vector<16x256xf32>
    %145 = arith.mulf %144, %134 : vector<16x256xf32>
    %146 = arith.addf %143, %145 : vector<16x256xf32>
    %147 = arith.mulf %134, %146 : vector<16x256xf32>
    %148 = vector.shape_cast %147 : vector<16x256xf32> to vector<1x16x256xf32>
    %cst_39 = arith.constant dense<0.000000e+00> : vector<1xf32>
    %149 = vector.multi_reduction <add>, %148, %cst_39 [1, 2] : vector<1x16x256xf32> to vector<1xf32>
    %150 = vector.shape_cast %149 : vector<1xf32> to vector<1x1x1xf32>
    %151 = vector.extract %150[0, 0, 0] : f32 from vector<1x1x1xf32>
    %152 = vector.broadcast %151 : f32 to vector<1x1xf32>
    %153 = tpu.reciprocal %152 {approx = true} : vector<1x1xf32> -> vector<1x1xf32>
    %154 = arith.mulf %135, %153 : vector<1x1xf32>
    %cst_40 = arith.constant 0.000000e+00 : f32
    %155 = vector.broadcast %cst_40 : f32 to vector<1x1xf32>
    %156 = arith.select %137, %154, %155 : vector<1x1xi1>, vector<1x1xf32>
    %157 = vector.broadcast %156 : vector<1x1xf32> to vector<16x256xf32>
    %158 = arith.mulf %157, %134 : vector<16x256xf32>
    %159 = arith.addf %118, %158 : vector<16x256xf32>
    %160 = vector.broadcast %156 : vector<1x1xf32> to vector<16x256xf32>
    %161 = arith.mulf %160, %146 : vector<16x256xf32>
    %162 = arith.subf %121, %161 : vector<16x256xf32>
    %163 = arith.mulf %162, %162 : vector<16x256xf32>
    %164 = vector.shape_cast %163 : vector<16x256xf32> to vector<1x16x256xf32>
    %cst_41 = arith.constant dense<0.000000e+00> : vector<1xf32>
    %165 = vector.multi_reduction <add>, %164, %cst_41 [1, 2] : vector<1x16x256xf32> to vector<1xf32>
    %166 = vector.shape_cast %165 : vector<1xf32> to vector<1x1x1xf32>
    %167 = vector.extract %166[0, 0, 0] : f32 from vector<1x1x1xf32>
    %168 = vector.broadcast %167 : f32 to vector<1x1xf32>
    %169 = tpu.reciprocal %135 {approx = true} : vector<1x1xf32> -> vector<1x1xf32>
    %170 = arith.mulf %168, %169 : vector<1x1xf32>
    %cst_42 = arith.constant 0.000000e+00 : f32
    %171 = vector.broadcast %cst_42 : f32 to vector<1x1xf32>
    %172 = arith.select %137, %170, %171 : vector<1x1xi1>, vector<1x1xf32>
    %173 = vector.broadcast %172 : vector<1x1xf32> to vector<16x256xf32>
    %174 = arith.mulf %173, %134 : vector<16x256xf32>
    %175 = arith.addf %162, %174 : vector<16x256xf32>
    %176 = arith.select %137, %168, %135 : vector<1x1xi1>, vector<1x1xf32>
    %c4_i32 = arith.constant 4 : i32
    %cst_43 = arith.constant 1.000000e-10 : f32
    %177 = vector.broadcast %cst_43 : f32 to vector<1x1xf32>
    %178 = arith.cmpf ogt, %176, %177 : vector<1x1xf32>
    %179 = arith.truncf %175 : vector<16x256xf32> to vector<16x256xbf16>
    %cst_44 = arith.constant dense<0.000000e+00> : vector<16x128xf32>
    %180 = tpu.matmul %179, %0, %cst_44 {dimension_numbers = #tpu.dot_dimension_numbers<[1], [1], [0], [0], [0, 0, 1, 0], [], []>} : vector<16x256xbf16>, vector<128x256xbf16>, vector<16x128xf32> -> vector<16x128xf32>
    %181 = arith.truncf %180 : vector<16x128xf32> to vector<16x128xbf16>
    %cst_45 = arith.constant dense<0.000000e+00> : vector<16x256xf32>
    %182 = tpu.matmul %181, %0, %cst_45 {dimension_numbers = #tpu.dot_dimension_numbers<[1], [0], [0], [1], [0, 0, 1, 1], [], []>} : vector<16x128xbf16>, vector<128x256xbf16>, vector<16x256xf32> -> vector<16x256xf32>
    %cst_46 = arith.constant 7.812500e-03 : f32
    %183 = vector.broadcast %cst_46 : f32 to vector<16x256xf32>
    %184 = arith.mulf %182, %183 : vector<16x256xf32>
    %cst_47 = arith.constant 5.000000e-01 : f32
    %185 = vector.broadcast %cst_47 : f32 to vector<16x256xf32>
    %186 = arith.mulf %185, %175 : vector<16x256xf32>
    %187 = arith.addf %184, %186 : vector<16x256xf32>
    %188 = arith.mulf %175, %187 : vector<16x256xf32>
    %189 = vector.shape_cast %188 : vector<16x256xf32> to vector<1x16x256xf32>
    %cst_48 = arith.constant dense<0.000000e+00> : vector<1xf32>
    %190 = vector.multi_reduction <add>, %189, %cst_48 [1, 2] : vector<1x16x256xf32> to vector<1xf32>
    %191 = vector.shape_cast %190 : vector<1xf32> to vector<1x1x1xf32>
    %192 = vector.extract %191[0, 0, 0] : f32 from vector<1x1x1xf32>
    %193 = vector.broadcast %192 : f32 to vector<1x1xf32>
    %194 = tpu.reciprocal %193 {approx = true} : vector<1x1xf32> -> vector<1x1xf32>
    %195 = arith.mulf %176, %194 : vector<1x1xf32>
    %cst_49 = arith.constant 0.000000e+00 : f32
    %196 = vector.broadcast %cst_49 : f32 to vector<1x1xf32>
    %197 = arith.select %178, %195, %196 : vector<1x1xi1>, vector<1x1xf32>
    %198 = vector.broadcast %197 : vector<1x1xf32> to vector<16x256xf32>
    %199 = arith.mulf %198, %175 : vector<16x256xf32>
    %200 = arith.addf %159, %199 : vector<16x256xf32>
    %201 = vector.broadcast %197 : vector<1x1xf32> to vector<16x256xf32>
    %202 = arith.mulf %201, %187 : vector<16x256xf32>
    %203 = arith.subf %162, %202 : vector<16x256xf32>
    %204 = arith.mulf %203, %203 : vector<16x256xf32>
    %205 = vector.shape_cast %204 : vector<16x256xf32> to vector<1x16x256xf32>
    %cst_50 = arith.constant dense<0.000000e+00> : vector<1xf32>
    %206 = vector.multi_reduction <add>, %205, %cst_50 [1, 2] : vector<1x16x256xf32> to vector<1xf32>
    %207 = vector.shape_cast %206 : vector<1xf32> to vector<1x1x1xf32>
    %208 = vector.extract %207[0, 0, 0] : f32 from vector<1x1x1xf32>
    %209 = vector.broadcast %208 : f32 to vector<1x1xf32>
    %210 = tpu.reciprocal %176 {approx = true} : vector<1x1xf32> -> vector<1x1xf32>
    %211 = arith.mulf %209, %210 : vector<1x1xf32>
    %cst_51 = arith.constant 0.000000e+00 : f32
    %212 = vector.broadcast %cst_51 : f32 to vector<1x1xf32>
    %213 = arith.select %178, %211, %212 : vector<1x1xi1>, vector<1x1xf32>
    %214 = vector.broadcast %213 : vector<1x1xf32> to vector<16x256xf32>
    %215 = arith.mulf %214, %175 : vector<16x256xf32>
    %216 = arith.addf %203, %215 : vector<16x256xf32>
    %217 = arith.select %178, %209, %176 : vector<1x1xi1>, vector<1x1xf32>
    %c5_i32 = arith.constant 5 : i32
    %cst_52 = arith.constant 1.000000e-10 : f32
    %218 = vector.broadcast %cst_52 : f32 to vector<1x1xf32>
    %219 = arith.cmpf ogt, %217, %218 : vector<1x1xf32>
    %220 = arith.truncf %216 : vector<16x256xf32> to vector<16x256xbf16>
    %cst_53 = arith.constant dense<0.000000e+00> : vector<16x128xf32>
    %221 = tpu.matmul %220, %0, %cst_53 {dimension_numbers = #tpu.dot_dimension_numbers<[1], [1], [0], [0], [0, 0, 1, 0], [], []>} : vector<16x256xbf16>, vector<128x256xbf16>, vector<16x128xf32> -> vector<16x128xf32>
    %222 = arith.truncf %221 : vector<16x128xf32> to vector<16x128xbf16>
    %cst_54 = arith.constant dense<0.000000e+00> : vector<16x256xf32>
    %223 = tpu.matmul %222, %0, %cst_54 {dimension_numbers = #tpu.dot_dimension_numbers<[1], [0], [0], [1], [0, 0, 1, 1], [], []>} : vector<16x128xbf16>, vector<128x256xbf16>, vector<16x256xf32> -> vector<16x256xf32>
    %cst_55 = arith.constant 7.812500e-03 : f32
    %224 = vector.broadcast %cst_55 : f32 to vector<16x256xf32>
    %225 = arith.mulf %223, %224 : vector<16x256xf32>
    %cst_56 = arith.constant 5.000000e-01 : f32
    %226 = vector.broadcast %cst_56 : f32 to vector<16x256xf32>
    %227 = arith.mulf %226, %216 : vector<16x256xf32>
    %228 = arith.addf %225, %227 : vector<16x256xf32>
    %229 = arith.mulf %216, %228 : vector<16x256xf32>
    %230 = vector.shape_cast %229 : vector<16x256xf32> to vector<1x16x256xf32>
    %cst_57 = arith.constant dense<0.000000e+00> : vector<1xf32>
    %231 = vector.multi_reduction <add>, %230, %cst_57 [1, 2] : vector<1x16x256xf32> to vector<1xf32>
    %232 = vector.shape_cast %231 : vector<1xf32> to vector<1x1x1xf32>
    %233 = vector.extract %232[0, 0, 0] : f32 from vector<1x1x1xf32>
    %234 = vector.broadcast %233 : f32 to vector<1x1xf32>
    %235 = tpu.reciprocal %234 {approx = true} : vector<1x1xf32> -> vector<1x1xf32>
    %236 = arith.mulf %217, %235 : vector<1x1xf32>
    %cst_58 = arith.constant 0.000000e+00 : f32
    %237 = vector.broadcast %cst_58 : f32 to vector<1x1xf32>
    %238 = arith.select %219, %236, %237 : vector<1x1xi1>, vector<1x1xf32>
    %239 = vector.broadcast %238 : vector<1x1xf32> to vector<16x256xf32>
    %240 = arith.mulf %239, %216 : vector<16x256xf32>
    %241 = arith.addf %200, %240 : vector<16x256xf32>
    %242 = vector.broadcast %238 : vector<1x1xf32> to vector<16x256xf32>
    %243 = arith.mulf %242, %228 : vector<16x256xf32>
    %244 = arith.subf %203, %243 : vector<16x256xf32>
    %245 = arith.mulf %244, %244 : vector<16x256xf32>
    %246 = vector.shape_cast %245 : vector<16x256xf32> to vector<1x16x256xf32>
    %cst_59 = arith.constant dense<0.000000e+00> : vector<1xf32>
    %247 = vector.multi_reduction <add>, %246, %cst_59 [1, 2] : vector<1x16x256xf32> to vector<1xf32>
    %248 = vector.shape_cast %247 : vector<1xf32> to vector<1x1x1xf32>
    %249 = vector.extract %248[0, 0, 0] : f32 from vector<1x1x1xf32>
    %250 = vector.broadcast %249 : f32 to vector<1x1xf32>
    %251 = tpu.reciprocal %217 {approx = true} : vector<1x1xf32> -> vector<1x1xf32>
    %252 = arith.mulf %250, %251 : vector<1x1xf32>
    %cst_60 = arith.constant 0.000000e+00 : f32
    %253 = vector.broadcast %cst_60 : f32 to vector<1x1xf32>
    %254 = arith.select %219, %252, %253 : vector<1x1xi1>, vector<1x1xf32>
    %255 = vector.broadcast %254 : vector<1x1xf32> to vector<16x256xf32>
    %256 = arith.mulf %255, %216 : vector<16x256xf32>
    %257 = arith.addf %244, %256 : vector<16x256xf32>
    %258 = arith.select %219, %250, %217 : vector<1x1xi1>, vector<1x1xf32>
    %c6_i32 = arith.constant 6 : i32
    %cst_61 = arith.constant 1.000000e-10 : f32
    %259 = vector.broadcast %cst_61 : f32 to vector<1x1xf32>
    %260 = arith.cmpf ogt, %258, %259 : vector<1x1xf32>
    %261 = arith.truncf %257 : vector<16x256xf32> to vector<16x256xbf16>
    %cst_62 = arith.constant dense<0.000000e+00> : vector<16x128xf32>
    %262 = tpu.matmul %261, %0, %cst_62 {dimension_numbers = #tpu.dot_dimension_numbers<[1], [1], [0], [0], [0, 0, 1, 0], [], []>} : vector<16x256xbf16>, vector<128x256xbf16>, vector<16x128xf32> -> vector<16x128xf32>
    %263 = arith.truncf %262 : vector<16x128xf32> to vector<16x128xbf16>
    %cst_63 = arith.constant dense<0.000000e+00> : vector<16x256xf32>
    %264 = tpu.matmul %263, %0, %cst_63 {dimension_numbers = #tpu.dot_dimension_numbers<[1], [0], [0], [1], [0, 0, 1, 1], [], []>} : vector<16x128xbf16>, vector<128x256xbf16>, vector<16x256xf32> -> vector<16x256xf32>
    %cst_64 = arith.constant 7.812500e-03 : f32
    %265 = vector.broadcast %cst_64 : f32 to vector<16x256xf32>
    %266 = arith.mulf %264, %265 : vector<16x256xf32>
    %cst_65 = arith.constant 5.000000e-01 : f32
    %267 = vector.broadcast %cst_65 : f32 to vector<16x256xf32>
    %268 = arith.mulf %267, %257 : vector<16x256xf32>
    %269 = arith.addf %266, %268 : vector<16x256xf32>
    %270 = arith.mulf %257, %269 : vector<16x256xf32>
    %271 = vector.shape_cast %270 : vector<16x256xf32> to vector<1x16x256xf32>
    %cst_66 = arith.constant dense<0.000000e+00> : vector<1xf32>
    %272 = vector.multi_reduction <add>, %271, %cst_66 [1, 2] : vector<1x16x256xf32> to vector<1xf32>
    %273 = vector.shape_cast %272 : vector<1xf32> to vector<1x1x1xf32>
    %274 = vector.extract %273[0, 0, 0] : f32 from vector<1x1x1xf32>
    %275 = vector.broadcast %274 : f32 to vector<1x1xf32>
    %276 = tpu.reciprocal %275 {approx = true} : vector<1x1xf32> -> vector<1x1xf32>
    %277 = arith.mulf %258, %276 : vector<1x1xf32>
    %cst_67 = arith.constant 0.000000e+00 : f32
    %278 = vector.broadcast %cst_67 : f32 to vector<1x1xf32>
    %279 = arith.select %260, %277, %278 : vector<1x1xi1>, vector<1x1xf32>
    %280 = vector.broadcast %279 : vector<1x1xf32> to vector<16x256xf32>
    %281 = arith.mulf %280, %257 : vector<16x256xf32>
    %282 = arith.addf %241, %281 : vector<16x256xf32>
    %283 = vector.broadcast %279 : vector<1x1xf32> to vector<16x256xf32>
    %284 = arith.mulf %283, %269 : vector<16x256xf32>
    %285 = arith.subf %244, %284 : vector<16x256xf32>
    %286 = arith.mulf %285, %285 : vector<16x256xf32>
    %287 = vector.shape_cast %286 : vector<16x256xf32> to vector<1x16x256xf32>
    %cst_68 = arith.constant dense<0.000000e+00> : vector<1xf32>
    %288 = vector.multi_reduction <add>, %287, %cst_68 [1, 2] : vector<1x16x256xf32> to vector<1xf32>
    %289 = vector.shape_cast %288 : vector<1xf32> to vector<1x1x1xf32>
    %290 = vector.extract %289[0, 0, 0] : f32 from vector<1x1x1xf32>
    %291 = vector.broadcast %290 : f32 to vector<1x1xf32>
    %292 = tpu.reciprocal %258 {approx = true} : vector<1x1xf32> -> vector<1x1xf32>
    %293 = arith.mulf %291, %292 : vector<1x1xf32>
    %cst_69 = arith.constant 0.000000e+00 : f32
    %294 = vector.broadcast %cst_69 : f32 to vector<1x1xf32>
    %295 = arith.select %260, %293, %294 : vector<1x1xi1>, vector<1x1xf32>
    %296 = vector.broadcast %295 : vector<1x1xf32> to vector<16x256xf32>
    %297 = arith.mulf %296, %257 : vector<16x256xf32>
    %298 = arith.addf %285, %297 : vector<16x256xf32>
    %299 = arith.select %260, %291, %258 : vector<1x1xi1>, vector<1x1xf32>
    %c7_i32 = arith.constant 7 : i32
    %cst_70 = arith.constant 1.000000e-10 : f32
    %300 = vector.broadcast %cst_70 : f32 to vector<1x1xf32>
    %301 = arith.cmpf ogt, %299, %300 : vector<1x1xf32>
    %302 = arith.truncf %298 : vector<16x256xf32> to vector<16x256xbf16>
    %cst_71 = arith.constant dense<0.000000e+00> : vector<16x128xf32>
    %303 = tpu.matmul %302, %0, %cst_71 {dimension_numbers = #tpu.dot_dimension_numbers<[1], [1], [0], [0], [0, 0, 1, 0], [], []>} : vector<16x256xbf16>, vector<128x256xbf16>, vector<16x128xf32> -> vector<16x128xf32>
    %304 = arith.truncf %303 : vector<16x128xf32> to vector<16x128xbf16>
    %cst_72 = arith.constant dense<0.000000e+00> : vector<16x256xf32>
    %305 = tpu.matmul %304, %0, %cst_72 {dimension_numbers = #tpu.dot_dimension_numbers<[1], [0], [0], [1], [0, 0, 1, 1], [], []>} : vector<16x128xbf16>, vector<128x256xbf16>, vector<16x256xf32> -> vector<16x256xf32>
    %cst_73 = arith.constant 7.812500e-03 : f32
    %306 = vector.broadcast %cst_73 : f32 to vector<16x256xf32>
    %307 = arith.mulf %305, %306 : vector<16x256xf32>
    %cst_74 = arith.constant 5.000000e-01 : f32
    %308 = vector.broadcast %cst_74 : f32 to vector<16x256xf32>
    %309 = arith.mulf %308, %298 : vector<16x256xf32>
    %310 = arith.addf %307, %309 : vector<16x256xf32>
    %311 = arith.mulf %298, %310 : vector<16x256xf32>
    %312 = vector.shape_cast %311 : vector<16x256xf32> to vector<1x16x256xf32>
    %cst_75 = arith.constant dense<0.000000e+00> : vector<1xf32>
    %313 = vector.multi_reduction <add>, %312, %cst_75 [1, 2] : vector<1x16x256xf32> to vector<1xf32>
    %314 = vector.shape_cast %313 : vector<1xf32> to vector<1x1x1xf32>
    %315 = vector.extract %314[0, 0, 0] : f32 from vector<1x1x1xf32>
    %316 = vector.broadcast %315 : f32 to vector<1x1xf32>
    %317 = tpu.reciprocal %316 {approx = true} : vector<1x1xf32> -> vector<1x1xf32>
    %318 = arith.mulf %299, %317 : vector<1x1xf32>
    %cst_76 = arith.constant 0.000000e+00 : f32
    %319 = vector.broadcast %cst_76 : f32 to vector<1x1xf32>
    %320 = arith.select %301, %318, %319 : vector<1x1xi1>, vector<1x1xf32>
    %321 = vector.broadcast %320 : vector<1x1xf32> to vector<16x256xf32>
    %322 = arith.mulf %321, %298 : vector<16x256xf32>
    %323 = arith.addf %282, %322 : vector<16x256xf32>
    %324 = vector.broadcast %320 : vector<1x1xf32> to vector<16x256xf32>
    %325 = arith.mulf %324, %310 : vector<16x256xf32>
    %326 = arith.subf %285, %325 : vector<16x256xf32>
    %327 = arith.mulf %326, %326 : vector<16x256xf32>
    %328 = vector.shape_cast %327 : vector<16x256xf32> to vector<1x16x256xf32>
    %cst_77 = arith.constant dense<0.000000e+00> : vector<1xf32>
    %329 = vector.multi_reduction <add>, %328, %cst_77 [1, 2] : vector<1x16x256xf32> to vector<1xf32>
    %330 = vector.shape_cast %329 : vector<1xf32> to vector<1x1x1xf32>
    %331 = vector.extract %330[0, 0, 0] : f32 from vector<1x1x1xf32>
    %332 = vector.broadcast %331 : f32 to vector<1x1xf32>
    %333 = tpu.reciprocal %299 {approx = true} : vector<1x1xf32> -> vector<1x1xf32>
    %334 = arith.mulf %332, %333 : vector<1x1xf32>
    %cst_78 = arith.constant 0.000000e+00 : f32
    %335 = vector.broadcast %cst_78 : f32 to vector<1x1xf32>
    %336 = arith.select %301, %334, %335 : vector<1x1xi1>, vector<1x1xf32>
    %337 = vector.broadcast %336 : vector<1x1xf32> to vector<16x256xf32>
    %338 = arith.mulf %337, %298 : vector<16x256xf32>
    %339 = arith.addf %326, %338 : vector<16x256xf32>
    %340 = arith.select %301, %332, %299 : vector<1x1xi1>, vector<1x1xf32>
    %c8_i32 = arith.constant 8 : i32
    %cst_79 = arith.constant 1.000000e-10 : f32
    %341 = vector.broadcast %cst_79 : f32 to vector<1x1xf32>
    %342 = arith.cmpf ogt, %340, %341 : vector<1x1xf32>
    %343 = arith.truncf %339 : vector<16x256xf32> to vector<16x256xbf16>
    %cst_80 = arith.constant dense<0.000000e+00> : vector<16x128xf32>
    %344 = tpu.matmul %343, %0, %cst_80 {dimension_numbers = #tpu.dot_dimension_numbers<[1], [1], [0], [0], [0, 0, 1, 0], [], []>} : vector<16x256xbf16>, vector<128x256xbf16>, vector<16x128xf32> -> vector<16x128xf32>
    %345 = arith.truncf %344 : vector<16x128xf32> to vector<16x128xbf16>
    %cst_81 = arith.constant dense<0.000000e+00> : vector<16x256xf32>
    %346 = tpu.matmul %345, %0, %cst_81 {dimension_numbers = #tpu.dot_dimension_numbers<[1], [0], [0], [1], [0, 0, 1, 1], [], []>} : vector<16x128xbf16>, vector<128x256xbf16>, vector<16x256xf32> -> vector<16x256xf32>
    %cst_82 = arith.constant 7.812500e-03 : f32
    %347 = vector.broadcast %cst_82 : f32 to vector<16x256xf32>
    %348 = arith.mulf %346, %347 : vector<16x256xf32>
    %cst_83 = arith.constant 5.000000e-01 : f32
    %349 = vector.broadcast %cst_83 : f32 to vector<16x256xf32>
    %350 = arith.mulf %349, %339 : vector<16x256xf32>
    %351 = arith.addf %348, %350 : vector<16x256xf32>
    %352 = arith.mulf %339, %351 : vector<16x256xf32>
    %353 = vector.shape_cast %352 : vector<16x256xf32> to vector<1x16x256xf32>
    %cst_84 = arith.constant dense<0.000000e+00> : vector<1xf32>
    %354 = vector.multi_reduction <add>, %353, %cst_84 [1, 2] : vector<1x16x256xf32> to vector<1xf32>
    %355 = vector.shape_cast %354 : vector<1xf32> to vector<1x1x1xf32>
    %356 = vector.extract %355[0, 0, 0] : f32 from vector<1x1x1xf32>
    %357 = vector.broadcast %356 : f32 to vector<1x1xf32>
    %358 = tpu.reciprocal %357 {approx = true} : vector<1x1xf32> -> vector<1x1xf32>
    %359 = arith.mulf %340, %358 : vector<1x1xf32>
    %cst_85 = arith.constant 0.000000e+00 : f32
    %360 = vector.broadcast %cst_85 : f32 to vector<1x1xf32>
    %361 = arith.select %342, %359, %360 : vector<1x1xi1>, vector<1x1xf32>
    %362 = vector.broadcast %361 : vector<1x1xf32> to vector<16x256xf32>
    %363 = arith.mulf %362, %339 : vector<16x256xf32>
    %364 = arith.addf %323, %363 : vector<16x256xf32>
    %365 = vector.broadcast %361 : vector<1x1xf32> to vector<16x256xf32>
    %366 = arith.mulf %365, %351 : vector<16x256xf32>
    %367 = arith.subf %326, %366 : vector<16x256xf32>
    %368 = arith.mulf %367, %367 : vector<16x256xf32>
    %369 = vector.shape_cast %368 : vector<16x256xf32> to vector<1x16x256xf32>
    %cst_86 = arith.constant dense<0.000000e+00> : vector<1xf32>
    %370 = vector.multi_reduction <add>, %369, %cst_86 [1, 2] : vector<1x16x256xf32> to vector<1xf32>
    %371 = vector.shape_cast %370 : vector<1xf32> to vector<1x1x1xf32>
    %372 = vector.extract %371[0, 0, 0] : f32 from vector<1x1x1xf32>
    %373 = vector.broadcast %372 : f32 to vector<1x1xf32>
    %374 = tpu.reciprocal %340 {approx = true} : vector<1x1xf32> -> vector<1x1xf32>
    %375 = arith.mulf %373, %374 : vector<1x1xf32>
    %cst_87 = arith.constant 0.000000e+00 : f32
    %376 = vector.broadcast %cst_87 : f32 to vector<1x1xf32>
    %377 = arith.select %342, %375, %376 : vector<1x1xi1>, vector<1x1xf32>
    %378 = vector.broadcast %377 : vector<1x1xf32> to vector<16x256xf32>
    %379 = arith.mulf %378, %339 : vector<16x256xf32>
    %380 = arith.addf %367, %379 : vector<16x256xf32>
    %381 = arith.select %342, %373, %340 : vector<1x1xi1>, vector<1x1xf32>
    %c9_i32 = arith.constant 9 : i32
    %cst_88 = arith.constant 1.000000e-10 : f32
    %382 = vector.broadcast %cst_88 : f32 to vector<1x1xf32>
    %383 = arith.cmpf ogt, %381, %382 : vector<1x1xf32>
    %384 = arith.truncf %380 : vector<16x256xf32> to vector<16x256xbf16>
    %cst_89 = arith.constant dense<0.000000e+00> : vector<16x128xf32>
    %385 = tpu.matmul %384, %0, %cst_89 {dimension_numbers = #tpu.dot_dimension_numbers<[1], [1], [0], [0], [0, 0, 1, 0], [], []>} : vector<16x256xbf16>, vector<128x256xbf16>, vector<16x128xf32> -> vector<16x128xf32>
    %386 = arith.truncf %385 : vector<16x128xf32> to vector<16x128xbf16>
    %cst_90 = arith.constant dense<0.000000e+00> : vector<16x256xf32>
    %387 = tpu.matmul %386, %0, %cst_90 {dimension_numbers = #tpu.dot_dimension_numbers<[1], [0], [0], [1], [0, 0, 1, 1], [], []>} : vector<16x128xbf16>, vector<128x256xbf16>, vector<16x256xf32> -> vector<16x256xf32>
    %cst_91 = arith.constant 7.812500e-03 : f32
    %388 = vector.broadcast %cst_91 : f32 to vector<16x256xf32>
    %389 = arith.mulf %387, %388 : vector<16x256xf32>
    %cst_92 = arith.constant 5.000000e-01 : f32
    %390 = vector.broadcast %cst_92 : f32 to vector<16x256xf32>
    %391 = arith.mulf %390, %380 : vector<16x256xf32>
    %392 = arith.addf %389, %391 : vector<16x256xf32>
    %393 = arith.mulf %380, %392 : vector<16x256xf32>
    %394 = vector.shape_cast %393 : vector<16x256xf32> to vector<1x16x256xf32>
    %cst_93 = arith.constant dense<0.000000e+00> : vector<1xf32>
    %395 = vector.multi_reduction <add>, %394, %cst_93 [1, 2] : vector<1x16x256xf32> to vector<1xf32>
    %396 = vector.shape_cast %395 : vector<1xf32> to vector<1x1x1xf32>
    %397 = vector.extract %396[0, 0, 0] : f32 from vector<1x1x1xf32>
    %398 = vector.broadcast %397 : f32 to vector<1x1xf32>
    %399 = tpu.reciprocal %398 {approx = true} : vector<1x1xf32> -> vector<1x1xf32>
    %400 = arith.mulf %381, %399 : vector<1x1xf32>
    %cst_94 = arith.constant 0.000000e+00 : f32
    %401 = vector.broadcast %cst_94 : f32 to vector<1x1xf32>
    %402 = arith.select %383, %400, %401 : vector<1x1xi1>, vector<1x1xf32>
    %403 = vector.broadcast %402 : vector<1x1xf32> to vector<16x256xf32>
    %404 = arith.mulf %403, %380 : vector<16x256xf32>
    %405 = arith.addf %364, %404 : vector<16x256xf32>
    %406 = vector.broadcast %402 : vector<1x1xf32> to vector<16x256xf32>
    %407 = arith.mulf %406, %392 : vector<16x256xf32>
    %408 = arith.subf %367, %407 : vector<16x256xf32>
    %409 = arith.mulf %408, %408 : vector<16x256xf32>
    %410 = vector.shape_cast %409 : vector<16x256xf32> to vector<1x16x256xf32>
    %cst_95 = arith.constant dense<0.000000e+00> : vector<1xf32>
    %411 = vector.multi_reduction <add>, %410, %cst_95 [1, 2] : vector<1x16x256xf32> to vector<1xf32>
    %412 = vector.shape_cast %411 : vector<1xf32> to vector<1x1x1xf32>
    %413 = vector.extract %412[0, 0, 0] : f32 from vector<1x1x1xf32>
    %414 = vector.broadcast %413 : f32 to vector<1x1xf32>
    %415 = tpu.reciprocal %381 {approx = true} : vector<1x1xf32> -> vector<1x1xf32>
    %416 = arith.mulf %414, %415 : vector<1x1xf32>
    %cst_96 = arith.constant 0.000000e+00 : f32
    %417 = vector.broadcast %cst_96 : f32 to vector<1x1xf32>
    %418 = arith.select %383, %416, %417 : vector<1x1xi1>, vector<1x1xf32>
    %419 = vector.broadcast %418 : vector<1x1xf32> to vector<16x256xf32>
    %420 = arith.mulf %419, %380 : vector<16x256xf32>
    %421 = arith.addf %408, %420 : vector<16x256xf32>
    %422 = arith.select %383, %414, %381 : vector<1x1xi1>, vector<1x1xf32>
    %c0_97 = arith.constant 0 : index
    %c0_98 = arith.constant 0 : index
    %423 = vector.load %arg3[%c0_97, %c0_98] : memref<16x256xf32, #tpu.memory_space<vmem>>, vector<16x256xf32>
    tpu.vector_store %arg3[%c0_97, %c0_98], %405 {strides = array<i32>} : memref<16x256xf32, #tpu.memory_space<vmem>>, vector<16x256xf32>,
    return
  }
}

</mosaic_0001>

<llo_original>
// kernel: tpu_custom_call.1
$region0: #{tpu_custom_call.1}
  #allocation0 [shape = 'u32[]', space=smem, size = 0x4, offset = 0x4, fixed_abs, tag = 'smem constant byte address 0x4 - core index']
  #allocation1 [shape = 'u32[144,128]{1,0:T(1,128)}', space=vmem, size = 0x12000, scoped, tag = 'internal scratch']
  %s0 = inlined_call_operand.hbm [shape: bf16[128,256], index: 0, kind: input, shape index: {}]
  %s1 = inlined_call_operand.hbm [shape: f32[16,256], index: 1, kind: input, shape index: {}]
  %s2 = inlined_call_operand.hbm [shape: f32[16,256], index: 2, kind: input, shape index: {}]
  %s3 = inlined_call_operand.hbm [shape: f32[16,256], index: 3, kind: output, shape index: {}]
  %s4 = sld [smem:[#allocation0]]
  $region34: #{tpu_custom_call.1} parent=0
    _
  %s6 = ssub.s32 1, %s4
  %s7 = scalar_select 0, %s6, %s4
  $region1: #{tpu_custom_call.1} parent=0
    #allocation2 [shape = 'u8[65536]{0}', space=vmem, size = 0x10000, scoped, tag = 'input window, operand 0, single buffered']
    #allocation3 [shape = 's32[1]{0}', space=sflag, size = 0x4, scoped, tag = 'scoped memory for tpu_custom_call.1']
    #allocation4 [shape = 's32[1]{0}', space=sflag, size = 0x4, scoped, tag = 'scoped memory for tpu_custom_call.1']
    #allocation5 [shape = 'u8[16384]{0}', space=vmem, size = 0x4000, scoped, tag = 'input window, operand 1, single buffered']
    #allocation6 [shape = 's32[1]{0}', space=sflag, size = 0x4, scoped, tag = 'scoped memory for tpu_custom_call.1']
    #allocation7 [shape = 'u8[16384]{0}', space=vmem, size = 0x4000, scoped, tag = 'input window, operand 2, single buffered']
    #allocation8 [shape = 'u8[16384]{0}', space=vmem, size = 0x4000, scoped, tag = 'output window, operand 0, single buffered']
    %8 = vsyncpa [#allocation3], 0
    %9 = vsyncpa [#allocation6], 0
    %10 = vsyncpa [#allocation4], 0
    // Predicated region
    $region2: #{tpu_custom_call.1} parent=1 // pred_check
      _
    $region3: #{tpu_custom_call.1} parent=1 // pred_check_branch
      %12 = sbr.rel (0) target = $region5
    $region4: #{tpu_custom_call.1} parent=1 // pred_region
      %s14 = ssub.s32 2048, 2048
      %15 = vsyncadd [#allocation3], %s14
      %s16 = sshll.u32 [#allocation2], 4
      %s17 = int_to_ptr.vmem [resolvable:$true] %s16
      %22 = dma.hbm_to_vmem [thread:$0]  %s0, 2048, %s17, [#allocation3], 128, 128, 8
    $region5: #{tpu_custom_call.1} parent=1 // pred_fallthru
      _
    // Predicated region
    $region6: #{tpu_custom_call.1} parent=1 // pred_check
      _
    $region7: #{tpu_custom_call.1} parent=1 // pred_check_branch
      %24 = sbr.rel (0) target = $region9
    $region8: #{tpu_custom_call.1} parent=1 // pred_region
      %s26 = ssub.s32 512, 512
      %27 = vsyncadd [#allocation6], %s26
      %s28 = sshll.u32 [#allocation5], 4
      %s29 = int_to_ptr.vmem [resolvable:$true] %s28
      %34 = dma.hbm_to_vmem [thread:$0]  %s1, 512, %s29, [#allocation6], 256, 256, 16
    $region9: #{tpu_custom_call.1} parent=1 // pred_fallthru
      _
    // Predicated region
    $region10: #{tpu_custom_call.1} parent=1 // pred_check
      _
    $region11: #{tpu_custom_call.1} parent=1 // pred_check_branch
      %36 = sbr.rel (0) target = $region13
    $region12: #{tpu_custom_call.1} parent=1 // pred_region
      %s38 = ssub.s32 512, 512
      %39 = vsyncadd [#allocation6], %s38
      %s40 = sshll.u32 [#allocation7], 4
      %s41 = int_to_ptr.vmem [resolvable:$true] %s40
      %46 = dma.hbm_to_vmem [thread:$0]  %s2, 512, %s41, [#allocation6], 256, 256, 16
    $region13: #{tpu_custom_call.1} parent=1 // pred_fallthru
      _
    // Predicated region
    $region14: #{tpu_custom_call.1} parent=1 // pred_check
      _
    $region15: #{tpu_custom_call.1} parent=1 // pred_check_branch
      %48 = sbr.rel (0) target = $region17
    $region16: #{tpu_custom_call.1} parent=1 // pred_region
      %49 = dma.done [#allocation3], 2048
    $region17: #{tpu_custom_call.1} parent=1 // pred_fallthru
      _
    // Predicated region
    $region18: #{tpu_custom_call.1} parent=1 // pred_check
      _
    $region19: #{tpu_custom_call.1} parent=1 // pred_check_branch
      %51 = sbr.rel (0) target = $region21
    $region20: #{tpu_custom_call.1} parent=1 // pred_region
      %52 = dma.done [#allocation6], 512
    $region21: #{tpu_custom_call.1} parent=1 // pred_fallthru
      _
    // Predicated region
    $region22: #{tpu_custom_call.1} parent=1 // pred_check
      _
    $region23: #{tpu_custom_call.1} parent=1 // pred_check_branch
      %54 = sbr.rel (0) target = $region25
    $region24: #{tpu_custom_call.1} parent=1 // pred_region
      %55 = dma.done [#allocation6], 512
    $region25: #{tpu_custom_call.1} parent=1 // pred_fallthru
      _
    %v57 = vld [vmem:[#allocation2] sm:$0xff]
    %v58 = vld [vmem:[#allocation2 + $0x8] sm:$0xff]
    %v59 = vld [vmem:[#allocation2 + $0x10] sm:$0xff]
    %v60 = vld [vmem:[#allocation2 + $0x18] sm:$0xff]
    %v61 = vld [vmem:[#allocation2 + $0x20] sm:$0xff]
    %v62 = vld [vmem:[#allocation2 + $0x28] sm:$0xff]
    %v63 = vld [vmem:[#allocation2 + $0x30] sm:$0xff]
    %v64 = vld [vmem:[#allocation2 + $0x38] sm:$0xff]
    %v65 = vld [vmem:[#allocation2 + $0x40] sm:$0xff]
    %v66 = vld [vmem:[#allocation2 + $0x48] sm:$0xff]
    %v67 = vld [vmem:[#allocation2 + $0x50] sm:$0xff]
    %v68 = vld [vmem:[#allocation2 + $0x58] sm:$0xff]
    %v69 = vld [vmem:[#allocation2 + $0x60] sm:$0xff]
    %v70 = vld [vmem:[#allocation2 + $0x68] sm:$0xff]
    %v71 = vld [vmem:[#allocation2 + $0x70] sm:$0xff]
    %v72 = vld [vmem:[#allocation2 + $0x78] sm:$0xff]
    %v73 = vld [vmem:[#allocation5] sm:$0xff]
    %v74 = vld [vmem:[#allocation5 + $0x8] sm:$0xff]
    %v75 = vld [vmem:[#allocation5 + $0x10] sm:$0xff]
    %v76 = vld [vmem:[#allocation5 + $0x18] sm:$0xff]
    %v77 = vld [vmem:[#allocation7] sm:$0xff]
    %v78 = vld [vmem:[#allocation7 + $0x8] sm:$0xff]
    %v79 = vld [vmem:[#allocation7 + $0x10] sm:$0xff]
    %v80 = vld [vmem:[#allocation7 + $0x18] sm:$0xff]
    %v81 = vmul.f32 %v77, 0.5
    %v82 = vmul.f32 %v78, 0.5
    %v83 = vmul.f32 %v79, 0.5
    %v84 = vmul.f32 %v80, 0.5
    %v85 = vadd.f32 %v73, %v81
    %v86 = vadd.f32 %v74, %v82
    %v87 = vadd.f32 %v75, %v83
    %v88 = vadd.f32 %v76, %v84
    %v89 = vmul.f32 %v85, %v85
    %v90 = vmul.f32 %v86, %v86
    %v91 = vmul.f32 %v87, %v87
    %v92 = vmul.f32 %v88, %v88
    %v93 = vadd.f32 %v89, %v90
    %v94 = vadd.f32 %v93, %v91
    %v95 = vadd.f32 %v94, %v92
    %96 = vadd.xlane.f32.xlu0 %v95
    %v97 = vpop.xlane.xlu0 %96
    %v98 = vrot.slane %v97, 4
    %v99 = vadd.f32 %v97, %v98
    %v100 = vrot.slane %v99, 2
    %v101 = vadd.f32 %v99, %v100
    %v102 = vrot.slane %v101, 1
    %v103 = vadd.f32 %v101, %v102
    %s104 = vtos %v103
    %v105 = vstv %s104
    %vm106 = vcmp.gt.f32.partialorder %v105, 1e-10
    %v107 = vpack.c.bf16 %v87, %v85
    %v108 = vpack.c.bf16 %v88, %v86
    %v125 = vunpack.c.l.b16 %v57
    %v126 = vunpack.c.h.b16 %v57
    %v127 = vunpack.c.l.b16 %v58
    %v128 = vunpack.c.h.b16 %v58
    %v129 = vunpack.c.l.b16 %v59
    %v130 = vunpack.c.h.b16 %v59
    %v131 = vunpack.c.l.b16 %v60
    %v132 = vunpack.c.h.b16 %v60
    %v133 = vunpack.c.l.b16 %v61
    %v134 = vunpack.c.h.b16 %v61
    %v135 = vunpack.c.l.b16 %v62
    %v136 = vunpack.c.h.b16 %v62
    %v137 = vunpack.c.l.b16 %v63
    %v138 = vunpack.c.h.b16 %v63
    %v139 = vunpack.c.l.b16 %v64
    %v140 = vunpack.c.h.b16 %v64
    %v141 = vunpack.c.l.b16 %v65
    %v142 = vunpack.c.h.b16 %v65
    %v143 = vunpack.c.l.b16 %v66
    %v144 = vunpack.c.h.b16 %v66
    %v145 = vunpack.c.l.b16 %v67
    %v146 = vunpack.c.h.b16 %v67
    %v147 = vunpack.c.l.b16 %v68
    %v148 = vunpack.c.h.b16 %v68
    %v149 = vunpack.c.l.b16 %v69
    %v150 = vunpack.c.h.b16 %v69
    %v151 = vunpack.c.l.b16 %v70
    %v152 = vunpack.c.h.b16 %v70
    %v153 = vunpack.c.l.b16 %v71
    %v154 = vunpack.c.h.b16 %v71
    %v155 = vunpack.c.l.b16 %v72
    %v156 = vunpack.c.h.b16 %v72
    %v157 = vpack.c.b16 %v127, %v125
    %v158 = vpack.c.b16 %v128, %v126
    %v159 = vpack.c.b16 %v131, %v129
    %v160 = vpack.c.b16 %v132, %v130
    %v161 = vpack.c.b16 %v135, %v133
    %v162 = vpack.c.b16 %v136, %v134
    %v163 = vpack.c.b16 %v139, %v137
    %v164 = vpack.c.b16 %v140, %v138
    %v165 = vpack.c.b16 %v143, %v141
    %v166 = vpack.c.b16 %v144, %v142
    %v167 = vpack.c.b16 %v147, %v145
    %v168 = vpack.c.b16 %v148, %v146
    %v169 = vpack.c.b16 %v151, %v149
    %v170 = vpack.c.b16 %v152, %v150
    %v171 = vpack.c.b16 %v155, %v153
    %v172 = vpack.c.b16 %v156, %v154
    %189 = vmatprep.subr.bf16.mxu0 %v158
    %190 = vmatpush1.bf16.xpose.msra.mxu0 %v157
    %191 = vmatprep.subr.bf16.mxu0 %v160
    %192 = vmatpush1.bf16.xpose.msra.mxu0 %v159
    %193 = vmatprep.subr.bf16.mxu0 %v162
    %194 = vmatpush1.bf16.xpose.msra.mxu0 %v161
    %195 = vmatprep.subr.bf16.mxu0 %v164
    %196 = vmatpush1.bf16.xpose.msra.mxu0 %v163
    %197 = vmatprep.subr.bf16.mxu0 %v166
    %198 = vmatpush1.bf16.xpose.msra.mxu0 %v165
    %199 = vmatprep.subr.bf16.mxu0 %v168
    %200 = vmatpush1.bf16.xpose.msra.mxu0 %v167
    %201 = vmatprep.subr.bf16.mxu0 %v170
    %202 = vmatpush1.bf16.xpose.msra.mxu0 %v169
    %203 = vmatprep.subr.bf16.mxu0 %v172
    %204 = vmatpush1.bf16.xpose.msra.mxu0 %v171
    %205 = vmatprep.subr.bf16.mxu0 0
    %206 = vmatpush1.bf16.xpose.msra.mxu0 0
    %207 = vmatprep.subr.bf16.mxu0 0
    %208 = vmatpush1.bf16.xpose.msra.mxu0 0
    %209 = vmatprep.subr.bf16.mxu0 0
    %210 = vmatpush1.bf16.xpose.msra.mxu0 0
    %211 = vmatprep.subr.bf16.mxu0 0
    %212 = vmatpush1.bf16.xpose.msra.mxu0 0
    %213 = vmatprep.subr.bf16.mxu0 0
    %214 = vmatpush1.bf16.xpose.msra.mxu0 0
    %215 = vmatprep.subr.bf16.mxu0 0
    %216 = vmatpush1.bf16.xpose.msra.mxu0 0
    %217 = vmatprep.subr.bf16.mxu0 0
    %218 = vmatpush1.bf16.xpose.msra.mxu0 0
    %219 = vmatprep.subr.bf16.mxu0 0
    %220 = vmatpush1.bf16.xpose.msra.mxu0 0
    %221 = vmatprep.mubr.bf16.mxu0 %v108
    %222 = vmatmul.mubr.bf16.gmra.mrb[0].mxu0 %v107
    %v223 = vpop.f32.mrb[0].mxu0
    %v224 = vadd.f32 0.0, %v223
    %v225 = vpop.f32.mrb[0].mxu0
    %v226 = vpop.f32.mrb[0].mxu0
    %v227 = vadd.f32 0.0, %v226
    %v228 = vpop.f32.mrb[0].mxu0
    %229 = vdwg.mxu0
    %v230 = vpack.c.bf16 %v227, %v224
    %231 = vmatprep.subr.bf16.mxu0 %v158
    %232 = vmatpush1.bf16.msra.mxu0 %v157
    %233 = vmatprep.subr.bf16.mxu0 %v160
    %234 = vmatpush1.bf16.msra.mxu0 %v159
    %235 = vmatprep.subr.bf16.mxu0 %v162
    %236 = vmatpush1.bf16.msra.mxu0 %v161
    %237 = vmatprep.subr.bf16.mxu0 %v164
    %238 = vmatpush1.bf16.msra.mxu0 %v163
    %239 = vmatprep.subr.bf16.mxu0 %v166
    %240 = vmatpush1.bf16.msra.mxu0 %v165
    %241 = vmatprep.subr.bf16.mxu0 %v168
    %242 = vmatpush1.bf16.msra.mxu0 %v167
    %243 = vmatprep.subr.bf16.mxu0 %v170
    %244 = vmatpush1.bf16.msra.mxu0 %v169
    %245 = vmatprep.subr.bf16.mxu0 %v172
    %246 = vmatpush1.bf16.msra.mxu0 %v171
    %247 = vmatprep.subr.bf16.mxu0 0
    %248 = vmatpush1.bf16.msra.mxu0 0
    %249 = vmatprep.subr.bf16.mxu0 0
    %250 = vmatpush1.bf16.msra.mxu0 0
    %251 = vmatprep.subr.bf16.mxu0 0
    %252 = vmatpush1.bf16.msra.mxu0 0
    %253 = vmatprep.subr.bf16.mxu0 0
    %254 = vmatpush1.bf16.msra.mxu0 0
    %255 = vmatprep.subr.bf16.mxu0 0
    %256 = vmatpush1.bf16.msra.mxu0 0
    %257 = vmatprep.subr.bf16.mxu0 0
    %258 = vmatpush1.bf16.msra.mxu0 0
    %259 = vmatprep.subr.bf16.mxu0 0
    %260 = vmatpush1.bf16.msra.mxu0 0
    %261 = vmatprep.subr.bf16.mxu0 0
    %262 = vmatpush1.bf16.msra.mxu0 0
    %263 = vmatprep.mubr.bf16.mxu0 0
    %264 = vmatmul.mubr.bf16.gmra.mrb[0].mxu0 %v230
    %v265 = vpop.f32.mrb[0].mxu0
    %v266 = vadd.f32 0.0, %v265
    %v267 = vpop.f32.mrb[0].mxu0
    %v268 = vadd.f32 0.0, %v267
    %v269 = vpop.f32.mrb[0].mxu0
    %v270 = vadd.f32 0.0, %v269
    %v271 = vpop.f32.mrb[0].mxu0
    %v272 = vadd.f32 0.0, %v271
    %273 = vdwg.mxu0
    %v274 = vmul.f32 %v266, 0.0078125
    %v275 = vmul.f32 %v268, 0.0078125
    %v276 = vmul.f32 %v270, 0.0078125
    %v277 = vmul.f32 %v272, 0.0078125
    %v278 = vmul.f32 %v85, 0.5
    %v279 = vmul.f32 %v86, 0.5
    %v280 = vmul.f32 %v87, 0.5
    %v281 = vmul.f32 %v88, 0.5
    %v282 = vadd.f32 %v274, %v278
    %v283 = vadd.f32 %v275, %v279
    %v284 = vadd.f32 %v276, %v280
    %v285 = vadd.f32 %v277, %v281
    %v286 = vmul.f32 %v85, %v282
    %v287 = vmul.f32 %v86, %v283
    %v288 = vmul.f32 %v87, %v284
    %v289 = vmul.f32 %v88, %v285
    %v290 = vadd.f32 %v286, %v287
    %v291 = vadd.f32 %v290, %v288
    %v292 = vadd.f32 %v291, %v289
    %293 = vadd.xlane.f32.xlu0 %v292
    %v294 = vpop.xlane.xlu0 %293
    %v295 = vrot.slane %v294, 4
    %v296 = vadd.f32 %v294, %v295
    %v297 = vrot.slane %v296, 2
    %v298 = vadd.f32 %v296, %v297
    %v299 = vrot.slane %v298, 1
    %v300 = vadd.f32 %v298, %v299
    %s301 = vtos %v300
    %v302 = vstv %s301
    %v303 = vrcp.pop %v302
    %v304 = vmul.f32 %v105, %v303
    %v305 = vsel %vm106, %v304, 0.0
    %v306 = vmul.f32 %v305, %v85
    %v307 = vmul.f32 %v305, %v86
    %v308 = vmul.f32 %v305, %v87
    %v309 = vmul.f32 %v305, %v88
    %v310 = vadd.f32 %v306, 0.0
    %v311 = vadd.f32 %v307, 0.0
    %v312 = vadd.f32 %v308, 0.0
    %v313 = vadd.f32 %v309, 0.0
    %v314 = vmul.f32 %v305, %v282
    %v315 = vmul.f32 %v305, %v283
    %v316 = vmul.f32 %v305, %v284
    %v317 = vmul.f32 %v305, %v285
    %v318 = vsub.f32 %v85, %v314
    %v319 = vsub.f32 %v86, %v315
    %v320 = vsub.f32 %v87, %v316
    %v321 = vsub.f32 %v88, %v317
    %v322 = vmul.f32 %v318, %v318
    %v323 = vmul.f32 %v319, %v319
    %v324 = vmul.f32 %v320, %v320
    %v325 = vmul.f32 %v321, %v321
    %v326 = vadd.f32 %v322, %v323
    %v327 = vadd.f32 %v326, %v324
    %v328 = vadd.f32 %v327, %v325
    %329 = vadd.xlane.f32.xlu0 %v328
    %v330 = vpop.xlane.xlu0 %329
    %v331 = vrot.slane %v330, 4
    %v332 = vadd.f32 %v330, %v331
    %v333 = vrot.slane %v332, 2
    %v334 = vadd.f32 %v332, %v333
    %v335 = vrot.slane %v334, 1
    %v336 = vadd.f32 %v334, %v335
    %s337 = vtos %v336
    %v338 = vstv %s337
    %v339 = vrcp.pop %v105
    %v340 = vmul.f32 %v338, %v339
    %v341 = vsel %vm106, %v340, 0.0
    %v342 = vmul.f32 %v341, %v85
    %v343 = vmul.f32 %v341, %v86
    %v344 = vmul.f32 %v341, %v87
    %v345 = vmul.f32 %v341, %v88
    %v346 = vadd.f32 %v318, %v342
    %v347 = vadd.f32 %v319, %v343
    %v348 = vadd.f32 %v320, %v344
    %v349 = vadd.f32 %v321, %v345
    %v350 = vsel %vm106, %v338, %v105
    %vm351 = vcmp.gt.f32.partialorder %v350, 1e-10
    %v352 = vpack.c.bf16 %v348, %v346
    %v353 = vpack.c.bf16 %v349, %v347
    %354 = vmatprep.subr.bf16.mxu0 %v158
    %355 = vmatpush1.bf16.xpose.msra.mxu0 %v157
    %356 = vmatprep.subr.bf16.mxu0 %v160
    %357 = vmatpush1.bf16.xpose.msra.mxu0 %v159
    %358 = vmatprep.subr.bf16.mxu0 %v162
    %359 = vmatpush1.bf16.xpose.msra.mxu0 %v161
    %360 = vmatprep.subr.bf16.mxu0 %v164
    %361 = vmatpush1.bf16.xpose.msra.mxu0 %v163
    %362 = vmatprep.subr.bf16.mxu0 %v166
    %363 = vmatpush1.bf16.xpose.msra.mxu0 %v165
    %364 = vmatprep.subr.bf16.mxu0 %v168
    %365 = vmatpush1.bf16.xpose.msra.mxu0 %v167
    %366 = vmatprep.subr.bf16.mxu0 %v170
    %367 = vmatpush1.bf16.xpose.msra.mxu0 %v169
    %368 = vmatprep.subr.bf16.mxu0 %v172
    %369 = vmatpush1.bf16.xpose.msra.mxu0 %v171
    %370 = vmatprep.subr.bf16.mxu0 0
    %371 = vmatpush1.bf16.xpose.msra.mxu0 0
    %372 = vmatprep.subr.bf16.mxu0 0
    %373 = vmatpush1.bf16.xpose.msra.mxu0 0
    %374 = vmatprep.subr.bf16.mxu0 0
    %375 = vmatpush1.bf16.xpose.msra.mxu0 0
    %376 = vmatprep.subr.bf16.mxu0 0
    %377 = vmatpush1.bf16.xpose.msra.mxu0 0
    %378 = vmatprep.subr.bf16.mxu0 0
    %379 = vmatpush1.bf16.xpose.msra.mxu0 0
    %380 = vmatprep.subr.bf16.mxu0 0
    %381 = vmatpush1.bf16.xpose.msra.mxu0 0
    %382 = vmatprep.subr.bf16.mxu0 0
    %383 = vmatpush1.bf16.xpose.msra.mxu0 0
    %384 = vmatprep.subr.bf16.mxu0 0
    %385 = vmatpush1.bf16.xpose.msra.mxu0 0
    %386 = vmatprep.mubr.bf16.mxu0 %v353
    %387 = vmatmul.mubr.bf16.gmra.mrb[0].mxu0 %v352
    %v388 = vpop.f32.mrb[0].mxu0
    %v389 = vadd.f32 0.0, %v388
    %v390 = vpop.f32.mrb[0].mxu0
    %v391 = vpop.f32.mrb[0].mxu0
    %v392 = vadd.f32 0.0, %v391
    %v393 = vpop.f32.mrb[0].mxu0
    %394 = vdwg.mxu0
    %v395 = vpack.c.bf16 %v392, %v389
    %396 = vmatprep.subr.bf16.mxu0 %v158
    %397 = vmatpush1.bf16.msra.mxu0 %v157
    %398 = vmatprep.subr.bf16.mxu0 %v160
    %399 = vmatpush1.bf16.msra.mxu0 %v159
    %400 = vmatprep.subr.bf16.mxu0 %v162
    %401 = vmatpush1.bf16.msra.mxu0 %v161
    %402 = vmatprep.subr.bf16.mxu0 %v164
    %403 = vmatpush1.bf16.msra.mxu0 %v163
    %404 = vmatprep.subr.bf16.mxu0 %v166
    %405 = vmatpush1.bf16.msra.mxu0 %v165
    %406 = vmatprep.subr.bf16.mxu0 %v168
    %407 = vmatpush1.bf16.msra.mxu0 %v167
    %408 = vmatprep.subr.bf16.mxu0 %v170
    %409 = vmatpush1.bf16.msra.mxu0 %v169
    %410 = vmatprep.subr.bf16.mxu0 %v172
    %411 = vmatpush1.bf16.msra.mxu0 %v171
    %412 = vmatprep.subr.bf16.mxu0 0
    %413 = vmatpush1.bf16.msra.mxu0 0
    %414 = vmatprep.subr.bf16.mxu0 0
    %415 = vmatpush1.bf16.msra.mxu0 0
    %416 = vmatprep.subr.bf16.mxu0 0
    %417 = vmatpush1.bf16.msra.mxu0 0
    %418 = vmatprep.subr.bf16.mxu0 0
    %419 = vmatpush1.bf16.msra.mxu0 0
    %420 = vmatprep.subr.bf16.mxu0 0
    %421 = vmatpush1.bf16.msra.mxu0 0
    %422 = vmatprep.subr.bf16.mxu0 0
    %423 = vmatpush1.bf16.msra.mxu0 0
    %424 = vmatprep.subr.bf16.mxu0 0
    %425 = vmatpush1.bf16.msra.mxu0 0
    %426 = vmatprep.subr.bf16.mxu0 0
    %427 = vmatpush1.bf16.msra.mxu0 0
    %428 = vmatprep.mubr.bf16.mxu0 0
    %429 = vmatmul.mubr.bf16.gmra.mrb[0].mxu0 %v395
    %v430 = vpop.f32.mrb[0].mxu0
    %v431 = vadd.f32 0.0, %v430
    %v432 = vpop.f32.mrb[0].mxu0
    %v433 = vadd.f32 0.0, %v432
    %v434 = vpop.f32.mrb[0].mxu0
    %v435 = vadd.f32 0.0, %v434
    %v436 = vpop.f32.mrb[0].mxu0
    %v437 = vadd.f32 0.0, %v436
    %438 = vdwg.mxu0
    %v439 = vmul.f32 %v431, 0.0078125
    %v440 = vmul.f32 %v433, 0.0078125
    %v441 = vmul.f32 %v435, 0.0078125
    %v442 = vmul.f32 %v437, 0.0078125
    %v443 = vmul.f32 %v346, 0.5
    %v444 = vmul.f32 %v347, 0.5
    %v445 = vmul.f32 %v348, 0.5
    %v446 = vmul.f32 %v349, 0.5
    %v447 = vadd.f32 %v439, %v443
    %v448 = vadd.f32 %v440, %v444
    %v449 = vadd.f32 %v441, %v445
    %v450 = vadd.f32 %v442, %v446
    %v451 = vmul.f32 %v346, %v447
    %v452 = vmul.f32 %v347, %v448
    %v453 = vmul.f32 %v348, %v449
    %v454 = vmul.f32 %v349, %v450
    %v455 = vadd.f32 %v451, %v452
    %v456 = vadd.f32 %v455, %v453
    %v457 = vadd.f32 %v456, %v454
    %458 = vadd.xlane.f32.xlu0 %v457
    %v459 = vpop.xlane.xlu0 %458
    %v460 = vrot.slane %v459, 4
    %v461 = vadd.f32 %v459, %v460
    %v462 = vrot.slane %v461, 2
    %v463 = vadd.f32 %v461, %v462
    %v464 = vrot.slane %v463, 1
    %v465 = vadd.f32 %v463, %v464
    %s466 = vtos %v465
    %v467 = vstv %s466
    %v468 = vrcp.pop %v467
    %v469 = vmul.f32 %v350, %v468
    %v470 = vsel %vm351, %v469, 0.0
    %v471 = vmul.f32 %v470, %v346
    %v472 = vmul.f32 %v470, %v347
    %v473 = vmul.f32 %v470, %v348
    %v474 = vmul.f32 %v470, %v349
    %v475 = vadd.f32 %v310, %v471
    %v476 = vadd.f32 %v311, %v472
    %v477 = vadd.f32 %v312, %v473
    %v478 = vadd.f32 %v313, %v474
    %v479 = vmul.f32 %v470, %v447
    %v480 = vmul.f32 %v470, %v448
    %v481 = vmul.f32 %v470, %v449
    %v482 = vmul.f32 %v470, %v450
    %v483 = vsub.f32 %v318, %v479
    %v484 = vsub.f32 %v319, %v480
    %v485 = vsub.f32 %v320, %v481
    %v486 = vsub.f32 %v321, %v482
    %v487 = vmul.f32 %v483, %v483
    %v488 = vmul.f32 %v484, %v484
    %v489 = vmul.f32 %v485, %v485
    %v490 = vmul.f32 %v486, %v486
    %v491 = vadd.f32 %v487, %v488
    %v492 = vadd.f32 %v491, %v489
    %v493 = vadd.f32 %v492, %v490
    %494 = vadd.xlane.f32.xlu0 %v493
    %v495 = vpop.xlane.xlu0 %494
    %v496 = vrot.slane %v495, 4
    %v497 = vadd.f32 %v495, %v496
    %v498 = vrot.slane %v497, 2
    %v499 = vadd.f32 %v497, %v498
    %v500 = vrot.slane %v499, 1
    %v501 = vadd.f32 %v499, %v500
    %s502 = vtos %v501
    %v503 = vstv %s502
    %v504 = vrcp.pop %v350
    %v505 = vmul.f32 %v503, %v504
    %v506 = vsel %vm351, %v505, 0.0
    %v507 = vmul.f32 %v506, %v346
    %v508 = vmul.f32 %v506, %v347
    %v509 = vmul.f32 %v506, %v348
    %v510 = vmul.f32 %v506, %v349
    %v511 = vadd.f32 %v483, %v507
    %v512 = vadd.f32 %v484, %v508
    %v513 = vadd.f32 %v485, %v509
    %v514 = vadd.f32 %v486, %v510
    %v515 = vsel %vm351, %v503, %v350
    %vm516 = vcmp.gt.f32.partialorder %v515, 1e-10
    %v517 = vpack.c.bf16 %v513, %v511
    %v518 = vpack.c.bf16 %v514, %v512
    %519 = vmatprep.subr.bf16.mxu0 %v158
    %520 = vmatpush1.bf16.xpose.msra.mxu0 %v157
    %521 = vmatprep.subr.bf16.mxu0 %v160
    %522 = vmatpush1.bf16.xpose.msra.mxu0 %v159
    %523 = vmatprep.subr.bf16.mxu0 %v162
    %524 = vmatpush1.bf16.xpose.msra.mxu0 %v161
    %525 = vmatprep.subr.bf16.mxu0 %v164
    %526 = vmatpush1.bf16.xpose.msra.mxu0 %v163
    %527 = vmatprep.subr.bf16.mxu0 %v166
    %528 = vmatpush1.bf16.xpose.msra.mxu0 %v165
    %529 = vmatprep.subr.bf16.mxu0 %v168
    %530 = vmatpush1.bf16.xpose.msra.mxu0 %v167
    %531 = vmatprep.subr.bf16.mxu0 %v170
    %532 = vmatpush1.bf16.xpose.msra.mxu0 %v169
    %533 = vmatprep.subr.bf16.mxu0 %v172
    %534 = vmatpush1.bf16.xpose.msra.mxu0 %v171
    %535 = vmatprep.subr.bf16.mxu0 0
    %536 = vmatpush1.bf16.xpose.msra.mxu0 0
    %537 = vmatprep.subr.bf16.mxu0 0
    %538 = vmatpush1.bf16.xpose.msra.mxu0 0
    %539 = vmatprep.subr.bf16.mxu0 0
    %540 = vmatpush1.bf16.xpose.msra.mxu0 0
    %541 = vmatprep.subr.bf16.mxu0 0
    %542 = vmatpush1.bf16.xpose.msra.mxu0 0
    %543 = vmatprep.subr.bf16.mxu0 0
    %544 = vmatpush1.bf16.xpose.msra.mxu0 0
    %545 = vmatprep.subr.bf16.mxu0 0
    %546 = vmatpush1.bf16.xpose.msra.mxu0 0
    %547 = vmatprep.subr.bf16.mxu0 0
    %548 = vmatpush1.bf16.xpose.msra.mxu0 0
    %549 = vmatprep.subr.bf16.mxu0 0
    %550 = vmatpush1.bf16.xpose.msra.mxu0 0
    %551 = vmatprep.mubr.bf16.mxu0 %v518
    %552 = vmatmul.mubr.bf16.gmra.mrb[0].mxu0 %v517
    %v553 = vpop.f32.mrb[0].mxu0
    %v554 = vadd.f32 0.0, %v553
    %v555 = vpop.f32.mrb[0].mxu0
    %v556 = vpop.f32.mrb[0].mxu0
    %v557 = vadd.f32 0.0, %v556
    %v558 = vpop.f32.mrb[0].mxu0
    %559 = vdwg.mxu0
    %v560 = vpack.c.bf16 %v557, %v554
    %561 = vmatprep.subr.bf16.mxu0 %v158
    %562 = vmatpush1.bf16.msra.mxu0 %v157
    %563 = vmatprep.subr.bf16.mxu0 %v160
    %564 = vmatpush1.bf16.msra.mxu0 %v159
    %565 = vmatprep.subr.bf16.mxu0 %v162
    %566 = vmatpush1.bf16.msra.mxu0 %v161
    %567 = vmatprep.subr.bf16.mxu0 %v164
    %568 = vmatpush1.bf16.msra.mxu0 %v163
    %569 = vmatprep.subr.bf16.mxu0 %v166
    %570 = vmatpush1.bf16.msra.mxu0 %v165
    %571 = vmatprep.subr.bf16.mxu0 %v168
    %572 = vmatpush1.bf16.msra.mxu0 %v167
    %573 = vmatprep.subr.bf16.mxu0 %v170
    %574 = vmatpush1.bf16.msra.mxu0 %v169
    %575 = vmatprep.subr.bf16.mxu0 %v172
    %576 = vmatpush1.bf16.msra.mxu0 %v171
    %577 = vmatprep.subr.bf16.mxu0 0
    %578 = vmatpush1.bf16.msra.mxu0 0
    %579 = vmatprep.subr.bf16.mxu0 0
    %580 = vmatpush1.bf16.msra.mxu0 0
    %581 = vmatprep.subr.bf16.mxu0 0
    %582 = vmatpush1.bf16.msra.mxu0 0
    %583 = vmatprep.subr.bf16.mxu0 0
    %584 = vmatpush1.bf16.msra.mxu0 0
    %585 = vmatprep.subr.bf16.mxu0 0
    %586 = vmatpush1.bf16.msra.mxu0 0
    %587 = vmatprep.subr.bf16.mxu0 0
    %588 = vmatpush1.bf16.msra.mxu0 0
    %589 = vmatprep.subr.bf16.mxu0 0
    %590 = vmatpush1.bf16.msra.mxu0 0
    %591 = vmatprep.subr.bf16.mxu0 0
    %592 = vmatpush1.bf16.msra.mxu0 0
    %593 = vmatprep.mubr.bf16.mxu0 0
    %594 = vmatmul.mubr.bf16.gmra.mrb[0].mxu0 %v560
    %v595 = vpop.f32.mrb[0].mxu0
    %v596 = vadd.f32 0.0, %v595
    %v597 = vpop.f32.mrb[0].mxu0
    %v598 = vadd.f32 0.0, %v597
    %v599 = vpop.f32.mrb[0].mxu0
    %v600 = vadd.f32 0.0, %v599
    %v601 = vpop.f32.mrb[0].mxu0
    %v602 = vadd.f32 0.0, %v601
    %603 = vdwg.mxu0
    %v604 = vmul.f32 %v596, 0.0078125
    %v605 = vmul.f32 %v598, 0.0078125
    %v606 = vmul.f32 %v600, 0.0078125
    %v607 = vmul.f32 %v602, 0.0078125
    %v608 = vmul.f32 %v511, 0.5
    %v609 = vmul.f32 %v512, 0.5
    %v610 = vmul.f32 %v513, 0.5
    %v611 = vmul.f32 %v514, 0.5
    %v612 = vadd.f32 %v604, %v608
    %v613 = vadd.f32 %v605, %v609
    %v614 = vadd.f32 %v606, %v610
    %v615 = vadd.f32 %v607, %v611
    %v616 = vmul.f32 %v511, %v612
    %v617 = vmul.f32 %v512, %v613
    %v618 = vmul.f32 %v513, %v614
    %v619 = vmul.f32 %v514, %v615
    %v620 = vadd.f32 %v616, %v617
    %v621 = vadd.f32 %v620, %v618
    %v622 = vadd.f32 %v621, %v619
    %623 = vadd.xlane.f32.xlu0 %v622
    %v624 = vpop.xlane.xlu0 %623
    %v625 = vrot.slane %v624, 4
    %v626 = vadd.f32 %v624, %v625
    %v627 = vrot.slane %v626, 2
    %v628 = vadd.f32 %v626, %v627
    %v629 = vrot.slane %v628, 1
    %v630 = vadd.f32 %v628, %v629
    %s631 = vtos %v630
    %v632 = vstv %s631
    %v633 = vrcp.pop %v632
    %v634 = vmul.f32 %v515, %v633
    %v635 = vsel %vm516, %v634, 0.0
    %v636 = vmul.f32 %v635, %v511
    %v637 = vmul.f32 %v635, %v512
    %v638 = vmul.f32 %v635, %v513
    %v639 = vmul.f32 %v635, %v514
    %v640 = vadd.f32 %v475, %v636
    %v641 = vadd.f32 %v476, %v637
    %v642 = vadd.f32 %v477, %v638
    %v643 = vadd.f32 %v478, %v639
    %v644 = vmul.f32 %v635, %v612
    %v645 = vmul.f32 %v635, %v613
    %v646 = vmul.f32 %v635, %v614
    %v647 = vmul.f32 %v635, %v615
    %v648 = vsub.f32 %v483, %v644
    %v649 = vsub.f32 %v484, %v645
    %v650 = vsub.f32 %v485, %v646
    %v651 = vsub.f32 %v486, %v647
    %v652 = vmul.f32 %v648, %v648
    %v653 = vmul.f32 %v649, %v649
    %v654 = vmul.f32 %v650, %v650
    %v655 = vmul.f32 %v651, %v651
    %v656 = vadd.f32 %v652, %v653
    %v657 = vadd.f32 %v656, %v654
    %v658 = vadd.f32 %v657, %v655
    %659 = vadd.xlane.f32.xlu0 %v658
    %v660 = vpop.xlane.xlu0 %659
    %v661 = vrot.slane %v660, 4
    %v662 = vadd.f32 %v660, %v661
    %v663 = vrot.slane %v662, 2
    %v664 = vadd.f32 %v662, %v663
    %v665 = vrot.slane %v664, 1
    %v666 = vadd.f32 %v664, %v665
    %s667 = vtos %v666
    %v668 = vstv %s667
    %v669 = vrcp.pop %v515
    %v670 = vmul.f32 %v668, %v669
    %v671 = vsel %vm516, %v670, 0.0
    %v672 = vmul.f32 %v671, %v511
    %v673 = vmul.f32 %v671, %v512
    %v674 = vmul.f32 %v671, %v513
    %v675 = vmul.f32 %v671, %v514
    %v676 = vadd.f32 %v648, %v672
    %v677 = vadd.f32 %v649, %v673
    %v678 = vadd.f32 %v650, %v674
    %v679 = vadd.f32 %v651, %v675
    %v680 = vsel %vm516, %v668, %v515
    %vm681 = vcmp.gt.f32.partialorder %v680, 1e-10
    %v682 = vpack.c.bf16 %v678, %v676
    %v683 = vpack.c.bf16 %v679, %v677
    %684 = vmatprep.subr.bf16.mxu0 %v158
    %685 = vmatpush1.bf16.xpose.msra.mxu0 %v157
    %686 = vmatprep.subr.bf16.mxu0 %v160
    %687 = vmatpush1.bf16.xpose.msra.mxu0 %v159
    %688 = vmatprep.subr.bf16.mxu0 %v162
    %689 = vmatpush1.bf16.xpose.msra.mxu0 %v161
    %690 = vmatprep.subr.bf16.mxu0 %v164
    %691 = vmatpush1.bf16.xpose.msra.mxu0 %v163
    %692 = vmatprep.subr.bf16.mxu0 %v166
    %693 = vmatpush1.bf16.xpose.msra.mxu0 %v165
    %694 = vmatprep.subr.bf16.mxu0 %v168
    %695 = vmatpush1.bf16.xpose.msra.mxu0 %v167
    %696 = vmatprep.subr.bf16.mxu0 %v170
    %697 = vmatpush1.bf16.xpose.msra.mxu0 %v169
    %698 = vmatprep.subr.bf16.mxu0 %v172
    %699 = vmatpush1.bf16.xpose.msra.mxu0 %v171
    %700 = vmatprep.subr.bf16.mxu0 0
    %701 = vmatpush1.bf16.xpose.msra.mxu0 0
    %702 = vmatprep.subr.bf16.mxu0 0
    %703 = vmatpush1.bf16.xpose.msra.mxu0 0
    %704 = vmatprep.subr.bf16.mxu0 0
    %705 = vmatpush1.bf16.xpose.msra.mxu0 0
    %706 = vmatprep.subr.bf16.mxu0 0
    %707 = vmatpush1.bf16.xpose.msra.mxu0 0
    %708 = vmatprep.subr.bf16.mxu0 0
    %709 = vmatpush1.bf16.xpose.msra.mxu0 0
    %710 = vmatprep.subr.bf16.mxu0 0
    %711 = vmatpush1.bf16.xpose.msra.mxu0 0
    %712 = vmatprep.subr.bf16.mxu0 0
    %713 = vmatpush1.bf16.xpose.msra.mxu0 0
    %714 = vmatprep.subr.bf16.mxu0 0
    %715 = vmatpush1.bf16.xpose.msra.mxu0 0
    %716 = vmatprep.mubr.bf16.mxu0 %v683
    %717 = vmatmul.mubr.bf16.gmra.mrb[0].mxu0 %v682
    %v718 = vpop.f32.mrb[0].mxu0
    %v719 = vadd.f32 0.0, %v718
    %v720 = vpop.f32.mrb[0].mxu0
    %v721 = vpop.f32.mrb[0].mxu0
    %v722 = vadd.f32 0.0, %v721
    %v723 = vpop.f32.mrb[0].mxu0
    %724 = vdwg.mxu0
    %v725 = vpack.c.bf16 %v722, %v719
    %726 = vmatprep.subr.bf16.mxu0 %v158
    %727 = vmatpush1.bf16.msra.mxu0 %v157
    %728 = vmatprep.subr.bf16.mxu0 %v160
    %729 = vmatpush1.bf16.msra.mxu0 %v159
    %730 = vmatprep.subr.bf16.mxu0 %v162
    %731 = vmatpush1.bf16.msra.mxu0 %v161
    %732 = vmatprep.subr.bf16.mxu0 %v164
    %733 = vmatpush1.bf16.msra.mxu0 %v163
    %734 = vmatprep.subr.bf16.mxu0 %v166
    %735 = vmatpush1.bf16.msra.mxu0 %v165
    %736 = vmatprep.subr.bf16.mxu0 %v168
    %737 = vmatpush1.bf16.msra.mxu0 %v167
    %738 = vmatprep.subr.bf16.mxu0 %v170
    %739 = vmatpush1.bf16.msra.mxu0 %v169
    %740 = vmatprep.subr.bf16.mxu0 %v172
    %741 = vmatpush1.bf16.msra.mxu0 %v171
    %742 = vmatprep.subr.bf16.mxu0 0
    %743 = vmatpush1.bf16.msra.mxu0 0
    %744 = vmatprep.subr.bf16.mxu0 0
    %745 = vmatpush1.bf16.msra.mxu0 0
    %746 = vmatprep.subr.bf16.mxu0 0
    %747 = vmatpush1.bf16.msra.mxu0 0
    %748 = vmatprep.subr.bf16.mxu0 0
    %749 = vmatpush1.bf16.msra.mxu0 0
    %750 = vmatprep.subr.bf16.mxu0 0
    %751 = vmatpush1.bf16.msra.mxu0 0
    %752 = vmatprep.subr.bf16.mxu0 0
    %753 = vmatpush1.bf16.msra.mxu0 0
    %754 = vmatprep.subr.bf16.mxu0 0
    %755 = vmatpush1.bf16.msra.mxu0 0
    %756 = vmatprep.subr.bf16.mxu0 0
    %757 = vmatpush1.bf16.msra.mxu0 0
    %758 = vmatprep.mubr.bf16.mxu0 0
    %759 = vmatmul.mubr.bf16.gmra.mrb[0].mxu0 %v725
    %v760 = vpop.f32.mrb[0].mxu0
    %v761 = vadd.f32 0.0, %v760
    %v762 = vpop.f32.mrb[0].mxu0
    %v763 = vadd.f32 0.0, %v762
    %v764 = vpop.f32.mrb[0].mxu0
    %v765 = vadd.f32 0.0, %v764
    %v766 = vpop.f32.mrb[0].mxu0
    %v767 = vadd.f32 0.0, %v766
    %768 = vdwg.mxu0
    %v769 = vmul.f32 %v761, 0.0078125
    %v770 = vmul.f32 %v763, 0.0078125
    %v771 = vmul.f32 %v765, 0.0078125
    %v772 = vmul.f32 %v767, 0.0078125
    %v773 = vmul.f32 %v676, 0.5
    %v774 = vmul.f32 %v677, 0.5
    %v775 = vmul.f32 %v678, 0.5
    %v776 = vmul.f32 %v679, 0.5
    %v777 = vadd.f32 %v769, %v773
    %v778 = vadd.f32 %v770, %v774
    %v779 = vadd.f32 %v771, %v775
    %v780 = vadd.f32 %v772, %v776
    %v781 = vmul.f32 %v676, %v777
    %v782 = vmul.f32 %v677, %v778
    %v783 = vmul.f32 %v678, %v779
    %v784 = vmul.f32 %v679, %v780
    %v785 = vadd.f32 %v781, %v782
    %v786 = vadd.f32 %v785, %v783
    %v787 = vadd.f32 %v786, %v784
    %788 = vadd.xlane.f32.xlu0 %v787
    %v789 = vpop.xlane.xlu0 %788
    %v790 = vrot.slane %v789, 4
    %v791 = vadd.f32 %v789, %v790
    %v792 = vrot.slane %v791, 2
    %v793 = vadd.f32 %v791, %v792
    %v794 = vrot.slane %v793, 1
    %v795 = vadd.f32 %v793, %v794
    %s796 = vtos %v795
    %v797 = vstv %s796
    %v798 = vrcp.pop %v797
    %v799 = vmul.f32 %v680, %v798
    %v800 = vsel %vm681, %v799, 0.0
    %v801 = vmul.f32 %v800, %v676
    %v802 = vmul.f32 %v800, %v677
    %v803 = vmul.f32 %v800, %v678
    %v804 = vmul.f32 %v800, %v679
    %v805 = vadd.f32 %v640, %v801
    %v806 = vadd.f32 %v641, %v802
    %v807 = vadd.f32 %v642, %v803
    %v808 = vadd.f32 %v643, %v804
    %v809 = vmul.f32 %v800, %v777
    %v810 = vmul.f32 %v800, %v778
    %v811 = vmul.f32 %v800, %v779
    %v812 = vmul.f32 %v800, %v780
    %v813 = vsub.f32 %v648, %v809
    %v814 = vsub.f32 %v649, %v810
    %v815 = vsub.f32 %v650, %v811
    %v816 = vsub.f32 %v651, %v812
    %v817 = vmul.f32 %v813, %v813
    %v818 = vmul.f32 %v814, %v814
    %v819 = vmul.f32 %v815, %v815
    %v820 = vmul.f32 %v816, %v816
    %v821 = vadd.f32 %v817, %v818
    %v822 = vadd.f32 %v821, %v819
    %v823 = vadd.f32 %v822, %v820
    %824 = vadd.xlane.f32.xlu0 %v823
    %v825 = vpop.xlane.xlu0 %824
    %v826 = vrot.slane %v825, 4
    %v827 = vadd.f32 %v825, %v826
    %v828 = vrot.slane %v827, 2
    %v829 = vadd.f32 %v827, %v828
    %v830 = vrot.slane %v829, 1
    %v831 = vadd.f32 %v829, %v830
    %s832 = vtos %v831
    %v833 = vstv %s832
    %v834 = vrcp.pop %v680
    %v835 = vmul.f32 %v833, %v834
    %v836 = vsel %vm681, %v835, 0.0
    %v837 = vmul.f32 %v836, %v676
    %v838 = vmul.f32 %v836, %v677
    %v839 = vmul.f32 %v836, %v678
    %v840 = vmul.f32 %v836, %v679
    %v841 = vadd.f32 %v813, %v837
    %v842 = vadd.f32 %v814, %v838
    %v843 = vadd.f32 %v815, %v839
    %v844 = vadd.f32 %v816, %v840
    %v845 = vsel %vm681, %v833, %v680
    %vm846 = vcmp.gt.f32.partialorder %v845, 1e-10
    %v847 = vpack.c.bf16 %v843, %v841
    %v848 = vpack.c.bf16 %v844, %v842
    %849 = vmatprep.subr.bf16.mxu0 %v158
    %850 = vmatpush1.bf16.xpose.msra.mxu0 %v157
    %851 = vmatprep.subr.bf16.mxu0 %v160
    %852 = vmatpush1.bf16.xpose.msra.mxu0 %v159
    %853 = vmatprep.subr.bf16.mxu0 %v162
    %854 = vmatpush1.bf16.xpose.msra.mxu0 %v161
    %855 = vmatprep.subr.bf16.mxu0 %v164
    %856 = vmatpush1.bf16.xpose.msra.mxu0 %v163
    %857 = vmatprep.subr.bf16.mxu0 %v166
    %858 = vmatpush1.bf16.xpose.msra.mxu0 %v165
    %859 = vmatprep.subr.bf16.mxu0 %v168
    %860 = vmatpush1.bf16.xpose.msra.mxu0 %v167
    %861 = vmatprep.subr.bf16.mxu0 %v170
    %862 = vmatpush1.bf16.xpose.msra.mxu0 %v169
    %863 = vmatprep.subr.bf16.mxu0 %v172
    %864 = vmatpush1.bf16.xpose.msra.mxu0 %v171
    %865 = vmatprep.subr.bf16.mxu0 0
    %866 = vmatpush1.bf16.xpose.msra.mxu0 0
    %867 = vmatprep.subr.bf16.mxu0 0
    %868 = vmatpush1.bf16.xpose.msra.mxu0 0
    %869 = vmatprep.subr.bf16.mxu0 0
    %870 = vmatpush1.bf16.xpose.msra.mxu0 0
    %871 = vmatprep.subr.bf16.mxu0 0
    %872 = vmatpush1.bf16.xpose.msra.mxu0 0
    %873 = vmatprep.subr.bf16.mxu0 0
    %874 = vmatpush1.bf16.xpose.msra.mxu0 0
    %875 = vmatprep.subr.bf16.mxu0 0
    %876 = vmatpush1.bf16.xpose.msra.mxu0 0
    %877 = vmatprep.subr.bf16.mxu0 0
    %878 = vmatpush1.bf16.xpose.msra.mxu0 0
    %879 = vmatprep.subr.bf16.mxu0 0
    %880 = vmatpush1.bf16.xpose.msra.mxu0 0
    %881 = vmatprep.mubr.bf16.mxu0 %v848
    %882 = vmatmul.mubr.bf16.gmra.mrb[0].mxu0 %v847
    %v883 = vpop.f32.mrb[0].mxu0
    %v884 = vadd.f32 0.0, %v883
    %v885 = vpop.f32.mrb[0].mxu0
    %v886 = vpop.f32.mrb[0].mxu0
    %v887 = vadd.f32 0.0, %v886
    %v888 = vpop.f32.mrb[0].mxu0
    %889 = vdwg.mxu0
    %v890 = vpack.c.bf16 %v887, %v884
    %891 = vmatprep.subr.bf16.mxu0 %v158
    %892 = vmatpush1.bf16.msra.mxu0 %v157
    %893 = vmatprep.subr.bf16.mxu0 %v160
    %894 = vmatpush1.bf16.msra.mxu0 %v159
    %895 = vmatprep.subr.bf16.mxu0 %v162
    %896 = vmatpush1.bf16.msra.mxu0 %v161
    %897 = vmatprep.subr.bf16.mxu0 %v164
    %898 = vmatpush1.bf16.msra.mxu0 %v163
    %899 = vmatprep.subr.bf16.mxu0 %v166
    %900 = vmatpush1.bf16.msra.mxu0 %v165
    %901 = vmatprep.subr.bf16.mxu0 %v168
    %902 = vmatpush1.bf16.msra.mxu0 %v167
    %903 = vmatprep.subr.bf16.mxu0 %v170
    %904 = vmatpush1.bf16.msra.mxu0 %v169
    %905 = vmatprep.subr.bf16.mxu0 %v172
    %906 = vmatpush1.bf16.msra.mxu0 %v171
    %907 = vmatprep.subr.bf16.mxu0 0
    %908 = vmatpush1.bf16.msra.mxu0 0
    %909 = vmatprep.subr.bf16.mxu0 0
    %910 = vmatpush1.bf16.msra.mxu0 0
    %911 = vmatprep.subr.bf16.mxu0 0
    %912 = vmatpush1.bf16.msra.mxu0 0
    %913 = vmatprep.subr.bf16.mxu0 0
    %914 = vmatpush1.bf16.msra.mxu0 0
    %915 = vmatprep.subr.bf16.mxu0 0
    %916 = vmatpush1.bf16.msra.mxu0 0
    %917 = vmatprep.subr.bf16.mxu0 0
    %918 = vmatpush1.bf16.msra.mxu0 0
    %919 = vmatprep.subr.bf16.mxu0 0
    %920 = vmatpush1.bf16.msra.mxu0 0
    %921 = vmatprep.subr.bf16.mxu0 0
    %922 = vmatpush1.bf16.msra.mxu0 0
    %923 = vmatprep.mubr.bf16.mxu0 0
    %924 = vmatmul.mubr.bf16.gmra.mrb[0].mxu0 %v890
    %v925 = vpop.f32.mrb[0].mxu0
    %v926 = vadd.f32 0.0, %v925
    %v927 = vpop.f32.mrb[0].mxu0
    %v928 = vadd.f32 0.0, %v927
    %v929 = vpop.f32.mrb[0].mxu0
    %v930 = vadd.f32 0.0, %v929
    %v931 = vpop.f32.mrb[0].mxu0
    %v932 = vadd.f32 0.0, %v931
    %933 = vdwg.mxu0
    %v934 = vmul.f32 %v926, 0.0078125
    %v935 = vmul.f32 %v928, 0.0078125
    %v936 = vmul.f32 %v930, 0.0078125
    %v937 = vmul.f32 %v932, 0.0078125
    %v938 = vmul.f32 %v841, 0.5
    %v939 = vmul.f32 %v842, 0.5
    %v940 = vmul.f32 %v843, 0.5
    %v941 = vmul.f32 %v844, 0.5
    %v942 = vadd.f32 %v934, %v938
    %v943 = vadd.f32 %v935, %v939
    %v944 = vadd.f32 %v936, %v940
    %v945 = vadd.f32 %v937, %v941
    %v946 = vmul.f32 %v841, %v942
    %v947 = vmul.f32 %v842, %v943
    %v948 = vmul.f32 %v843, %v944
    %v949 = vmul.f32 %v844, %v945
    %v950 = vadd.f32 %v946, %v947
    %v951 = vadd.f32 %v950, %v948
    %v952 = vadd.f32 %v951, %v949
    %953 = vadd.xlane.f32.xlu0 %v952
    %v954 = vpop.xlane.xlu0 %953
    %v955 = vrot.slane %v954, 4
    %v956 = vadd.f32 %v954, %v955
    %v957 = vrot.slane %v956, 2
    %v958 = vadd.f32 %v956, %v957
    %v959 = vrot.slane %v958, 1
    %v960 = vadd.f32 %v958, %v959
    %s961 = vtos %v960
    %v962 = vstv %s961
    %v963 = vrcp.pop %v962
    %v964 = vmul.f32 %v845, %v963
    %v965 = vsel %vm846, %v964, 0.0
    %v966 = vmul.f32 %v965, %v841
    %v967 = vmul.f32 %v965, %v842
    %v968 = vmul.f32 %v965, %v843
    %v969 = vmul.f32 %v965, %v844
    %v970 = vadd.f32 %v805, %v966
    %v971 = vadd.f32 %v806, %v967
    %v972 = vadd.f32 %v807, %v968
    %v973 = vadd.f32 %v808, %v969
    %v974 = vmul.f32 %v965, %v942
    %v975 = vmul.f32 %v965, %v943
    %v976 = vmul.f32 %v965, %v944
    %v977 = vmul.f32 %v965, %v945
    %v978 = vsub.f32 %v813, %v974
    %v979 = vsub.f32 %v814, %v975
    %v980 = vsub.f32 %v815, %v976
    %v981 = vsub.f32 %v816, %v977
    %v982 = vmul.f32 %v978, %v978
    %v983 = vmul.f32 %v979, %v979
    %v984 = vmul.f32 %v980, %v980
    %v985 = vmul.f32 %v981, %v981
    %v986 = vadd.f32 %v982, %v983
    %v987 = vadd.f32 %v986, %v984
    %v988 = vadd.f32 %v987, %v985
    %989 = vadd.xlane.f32.xlu0 %v988
    %v990 = vpop.xlane.xlu0 %989
    %v991 = vrot.slane %v990, 4
    %v992 = vadd.f32 %v990, %v991
    %v993 = vrot.slane %v992, 2
    %v994 = vadd.f32 %v992, %v993
    %v995 = vrot.slane %v994, 1
    %v996 = vadd.f32 %v994, %v995
    %s997 = vtos %v996
    %v998 = vstv %s997
    %v999 = vrcp.pop %v845
    %v1000 = vmul.f32 %v998, %v999
    %v1001 = vsel %vm846, %v1000, 0.0
    %v1002 = vmul.f32 %v1001, %v841
    %v1003 = vmul.f32 %v1001, %v842
    %v1004 = vmul.f32 %v1001, %v843
    %v1005 = vmul.f32 %v1001, %v844
    %v1006 = vadd.f32 %v978, %v1002
    %v1007 = vadd.f32 %v979, %v1003
    %v1008 = vadd.f32 %v980, %v1004
    %v1009 = vadd.f32 %v981, %v1005
    %v1010 = vsel %vm846, %v998, %v845
    %vm1011 = vcmp.gt.f32.partialorder %v1010, 1e-10
    %v1012 = vpack.c.bf16 %v1008, %v1006
    %v1013 = vpack.c.bf16 %v1009, %v1007
    %1014 = vmatprep.subr.bf16.mxu0 %v158
    %1015 = vmatpush1.bf16.xpose.msra.mxu0 %v157
    %1016 = vmatprep.subr.bf16.mxu0 %v160
    %1017 = vmatpush1.bf16.xpose.msra.mxu0 %v159
    %1018 = vmatprep.subr.bf16.mxu0 %v162
    %1019 = vmatpush1.bf16.xpose.msra.mxu0 %v161
    %1020 = vmatprep.subr.bf16.mxu0 %v164
    %1021 = vmatpush1.bf16.xpose.msra.mxu0 %v163
    %1022 = vmatprep.subr.bf16.mxu0 %v166
    %1023 = vmatpush1.bf16.xpose.msra.mxu0 %v165
    %1024 = vmatprep.subr.bf16.mxu0 %v168
    %1025 = vmatpush1.bf16.xpose.msra.mxu0 %v167
    %1026 = vmatprep.subr.bf16.mxu0 %v170
    %1027 = vmatpush1.bf16.xpose.msra.mxu0 %v169
    %1028 = vmatprep.subr.bf16.mxu0 %v172
    %1029 = vmatpush1.bf16.xpose.msra.mxu0 %v171
    %1030 = vmatprep.subr.bf16.mxu0 0
    %1031 = vmatpush1.bf16.xpose.msra.mxu0 0
    %1032 = vmatprep.subr.bf16.mxu0 0
    %1033 = vmatpush1.bf16.xpose.msra.mxu0 0
    %1034 = vmatprep.subr.bf16.mxu0 0
    %1035 = vmatpush1.bf16.xpose.msra.mxu0 0
    %1036 = vmatprep.subr.bf16.mxu0 0
    %1037 = vmatpush1.bf16.xpose.msra.mxu0 0
    %1038 = vmatprep.subr.bf16.mxu0 0
    %1039 = vmatpush1.bf16.xpose.msra.mxu0 0
    %1040 = vmatprep.subr.bf16.mxu0 0
    %1041 = vmatpush1.bf16.xpose.msra.mxu0 0
    %1042 = vmatprep.subr.bf16.mxu0 0
    %1043 = vmatpush1.bf16.xpose.msra.mxu0 0
    %1044 = vmatprep.subr.bf16.mxu0 0
    %1045 = vmatpush1.bf16.xpose.msra.mxu0 0
    %1046 = vmatprep.mubr.bf16.mxu0 %v1013
    %1047 = vmatmul.mubr.bf16.gmra.mrb[0].mxu0 %v1012
    %v1048 = vpop.f32.mrb[0].mxu0
    %v1049 = vadd.f32 0.0, %v1048
    %v1050 = vpop.f32.mrb[0].mxu0
    %v1051 = vpop.f32.mrb[0].mxu0
    %v1052 = vadd.f32 0.0, %v1051
    %v1053 = vpop.f32.mrb[0].mxu0
    %1054 = vdwg.mxu0
    %v1055 = vpack.c.bf16 %v1052, %v1049
    %1056 = vmatprep.subr.bf16.mxu0 %v158
    %1057 = vmatpush1.bf16.msra.mxu0 %v157
    %1058 = vmatprep.subr.bf16.mxu0 %v160
    %1059 = vmatpush1.bf16.msra.mxu0 %v159
    %1060 = vmatprep.subr.bf16.mxu0 %v162
    %1061 = vmatpush1.bf16.msra.mxu0 %v161
    %1062 = vmatprep.subr.bf16.mxu0 %v164
    %1063 = vmatpush1.bf16.msra.mxu0 %v163
    %1064 = vmatprep.subr.bf16.mxu0 %v166
    %1065 = vmatpush1.bf16.msra.mxu0 %v165
    %1066 = vmatprep.subr.bf16.mxu0 %v168
    %1067 = vmatpush1.bf16.msra.mxu0 %v167
    %1068 = vmatprep.subr.bf16.mxu0 %v170
    %1069 = vmatpush1.bf16.msra.mxu0 %v169
    %1070 = vmatprep.subr.bf16.mxu0 %v172
    %1071 = vmatpush1.bf16.msra.mxu0 %v171
    %1072 = vmatprep.subr.bf16.mxu0 0
    %1073 = vmatpush1.bf16.msra.mxu0 0
    %1074 = vmatprep.subr.bf16.mxu0 0
    %1075 = vmatpush1.bf16.msra.mxu0 0
    %1076 = vmatprep.subr.bf16.mxu0 0
    %1077 = vmatpush1.bf16.msra.mxu0 0
    %1078 = vmatprep.subr.bf16.mxu0 0
    %1079 = vmatpush1.bf16.msra.mxu0 0
    %1080 = vmatprep.subr.bf16.mxu0 0
    %1081 = vmatpush1.bf16.msra.mxu0 0
    %1082 = vmatprep.subr.bf16.mxu0 0
    %1083 = vmatpush1.bf16.msra.mxu0 0
    %1084 = vmatprep.subr.bf16.mxu0 0
    %1085 = vmatpush1.bf16.msra.mxu0 0
    %1086 = vmatprep.subr.bf16.mxu0 0
    %1087 = vmatpush1.bf16.msra.mxu0 0
    %1088 = vmatprep.mubr.bf16.mxu0 0
    %1089 = vmatmul.mubr.bf16.gmra.mrb[0].mxu0 %v1055
    %v1090 = vpop.f32.mrb[0].mxu0
    %v1091 = vadd.f32 0.0, %v1090
    %v1092 = vpop.f32.mrb[0].mxu0
    %v1093 = vadd.f32 0.0, %v1092
    %v1094 = vpop.f32.mrb[0].mxu0
    %v1095 = vadd.f32 0.0, %v1094
    %v1096 = vpop.f32.mrb[0].mxu0
    %v1097 = vadd.f32 0.0, %v1096
    %1098 = vdwg.mxu0
    %v1099 = vmul.f32 %v1091, 0.0078125
    %v1100 = vmul.f32 %v1093, 0.0078125
    %v1101 = vmul.f32 %v1095, 0.0078125
    %v1102 = vmul.f32 %v1097, 0.0078125
    %v1103 = vmul.f32 %v1006, 0.5
    %v1104 = vmul.f32 %v1007, 0.5
    %v1105 = vmul.f32 %v1008, 0.5
    %v1106 = vmul.f32 %v1009, 0.5
    %v1107 = vadd.f32 %v1099, %v1103
    %v1108 = vadd.f32 %v1100, %v1104
    %v1109 = vadd.f32 %v1101, %v1105
    %v1110 = vadd.f32 %v1102, %v1106
    %v1111 = vmul.f32 %v1006, %v1107
    %v1112 = vmul.f32 %v1007, %v1108
    %v1113 = vmul.f32 %v1008, %v1109
    %v1114 = vmul.f32 %v1009, %v1110
    %v1115 = vadd.f32 %v1111, %v1112
    %v1116 = vadd.f32 %v1115, %v1113
    %v1117 = vadd.f32 %v1116, %v1114
    %1118 = vadd.xlane.f32.xlu0 %v1117
    %v1119 = vpop.xlane.xlu0 %1118
    %v1120 = vrot.slane %v1119, 4
    %v1121 = vadd.f32 %v1119, %v1120
    %v1122 = vrot.slane %v1121, 2
    %v1123 = vadd.f32 %v1121, %v1122
    %v1124 = vrot.slane %v1123, 1
    %v1125 = vadd.f32 %v1123, %v1124
    %s1126 = vtos %v1125
    %v1127 = vstv %s1126
    %v1128 = vrcp.pop %v1127
    %v1129 = vmul.f32 %v1010, %v1128
    %v1130 = vsel %vm1011, %v1129, 0.0
    %v1131 = vmul.f32 %v1130, %v1006
    %v1132 = vmul.f32 %v1130, %v1007
    %v1133 = vmul.f32 %v1130, %v1008
    %v1134 = vmul.f32 %v1130, %v1009
    %v1135 = vadd.f32 %v970, %v1131
    %v1136 = vadd.f32 %v971, %v1132
    %v1137 = vadd.f32 %v972, %v1133
    %v1138 = vadd.f32 %v973, %v1134
    %v1139 = vmul.f32 %v1130, %v1107
    %v1140 = vmul.f32 %v1130, %v1108
    %v1141 = vmul.f32 %v1130, %v1109
    %v1142 = vmul.f32 %v1130, %v1110
    %v1143 = vsub.f32 %v978, %v1139
    %v1144 = vsub.f32 %v979, %v1140
    %v1145 = vsub.f32 %v980, %v1141
    %v1146 = vsub.f32 %v981, %v1142
    %v1147 = vmul.f32 %v1143, %v1143
    %v1148 = vmul.f32 %v1144, %v1144
    %v1149 = vmul.f32 %v1145, %v1145
    %v1150 = vmul.f32 %v1146, %v1146
    %v1151 = vadd.f32 %v1147, %v1148
    %v1152 = vadd.f32 %v1151, %v1149
    %v1153 = vadd.f32 %v1152, %v1150
    %1154 = vadd.xlane.f32.xlu0 %v1153
    %v1155 = vpop.xlane.xlu0 %1154
    %v1156 = vrot.slane %v1155, 4
    %v1157 = vadd.f32 %v1155, %v1156
    %v1158 = vrot.slane %v1157, 2
    %v1159 = vadd.f32 %v1157, %v1158
    %v1160 = vrot.slane %v1159, 1
    %v1161 = vadd.f32 %v1159, %v1160
    %s1162 = vtos %v1161
    %v1163 = vstv %s1162
    %v1164 = vrcp.pop %v1010
    %v1165 = vmul.f32 %v1163, %v1164
    %v1166 = vsel %vm1011, %v1165, 0.0
    %v1167 = vmul.f32 %v1166, %v1006
    %v1168 = vmul.f32 %v1166, %v1007
    %v1169 = vmul.f32 %v1166, %v1008
    %v1170 = vmul.f32 %v1166, %v1009
    %v1171 = vadd.f32 %v1143, %v1167
    %v1172 = vadd.f32 %v1144, %v1168
    %v1173 = vadd.f32 %v1145, %v1169
    %v1174 = vadd.f32 %v1146, %v1170
    %v1175 = vsel %vm1011, %v1163, %v1010
    %vm1176 = vcmp.gt.f32.partialorder %v1175, 1e-10
    %v1177 = vpack.c.bf16 %v1173, %v1171
    %v1178 = vpack.c.bf16 %v1174, %v1172
    %1179 = vmatprep.subr.bf16.mxu0 %v158
    %1180 = vmatpush1.bf16.xpose.msra.mxu0 %v157
    %1181 = vmatprep.subr.bf16.mxu0 %v160
    %1182 = vmatpush1.bf16.xpose.msra.mxu0 %v159
    %1183 = vmatprep.subr.bf16.mxu0 %v162
    %1184 = vmatpush1.bf16.xpose.msra.mxu0 %v161
    %1185 = vmatprep.subr.bf16.mxu0 %v164
    %1186 = vmatpush1.bf16.xpose.msra.mxu0 %v163
    %1187 = vmatprep.subr.bf16.mxu0 %v166
    %1188 = vmatpush1.bf16.xpose.msra.mxu0 %v165
    %1189 = vmatprep.subr.bf16.mxu0 %v168
    %1190 = vmatpush1.bf16.xpose.msra.mxu0 %v167
    %1191 = vmatprep.subr.bf16.mxu0 %v170
    %1192 = vmatpush1.bf16.xpose.msra.mxu0 %v169
    %1193 = vmatprep.subr.bf16.mxu0 %v172
    %1194 = vmatpush1.bf16.xpose.msra.mxu0 %v171
    %1195 = vmatprep.subr.bf16.mxu0 0
    %1196 = vmatpush1.bf16.xpose.msra.mxu0 0
    %1197 = vmatprep.subr.bf16.mxu0 0
    %1198 = vmatpush1.bf16.xpose.msra.mxu0 0
    %1199 = vmatprep.subr.bf16.mxu0 0
    %1200 = vmatpush1.bf16.xpose.msra.mxu0 0
    %1201 = vmatprep.subr.bf16.mxu0 0
    %1202 = vmatpush1.bf16.xpose.msra.mxu0 0
    %1203 = vmatprep.subr.bf16.mxu0 0
    %1204 = vmatpush1.bf16.xpose.msra.mxu0 0
    %1205 = vmatprep.subr.bf16.mxu0 0
    %1206 = vmatpush1.bf16.xpose.msra.mxu0 0
    %1207 = vmatprep.subr.bf16.mxu0 0
    %1208 = vmatpush1.bf16.xpose.msra.mxu0 0
    %1209 = vmatprep.subr.bf16.mxu0 0
    %1210 = vmatpush1.bf16.xpose.msra.mxu0 0
    %1211 = vmatprep.mubr.bf16.mxu0 %v1178
    %1212 = vmatmul.mubr.bf16.gmra.mrb[0].mxu0 %v1177
    %v1213 = vpop.f32.mrb[0].mxu0
    %v1214 = vadd.f32 0.0, %v1213
    %v1215 = vpop.f32.mrb[0].mxu0
    %v1216 = vpop.f32.mrb[0].mxu0
    %v1217 = vadd.f32 0.0, %v1216
    %v1218 = vpop.f32.mrb[0].mxu0
    %1219 = vdwg.mxu0
    %v1220 = vpack.c.bf16 %v1217, %v1214
    %1221 = vmatprep.subr.bf16.mxu0 %v158
    %1222 = vmatpush1.bf16.msra.mxu0 %v157
    %1223 = vmatprep.subr.bf16.mxu0 %v160
    %1224 = vmatpush1.bf16.msra.mxu0 %v159
    %1225 = vmatprep.subr.bf16.mxu0 %v162
    %1226 = vmatpush1.bf16.msra.mxu0 %v161
    %1227 = vmatprep.subr.bf16.mxu0 %v164
    %1228 = vmatpush1.bf16.msra.mxu0 %v163
    %1229 = vmatprep.subr.bf16.mxu0 %v166
    %1230 = vmatpush1.bf16.msra.mxu0 %v165
    %1231 = vmatprep.subr.bf16.mxu0 %v168
    %1232 = vmatpush1.bf16.msra.mxu0 %v167
    %1233 = vmatprep.subr.bf16.mxu0 %v170
    %1234 = vmatpush1.bf16.msra.mxu0 %v169
    %1235 = vmatprep.subr.bf16.mxu0 %v172
    %1236 = vmatpush1.bf16.msra.mxu0 %v171
    %1237 = vmatprep.subr.bf16.mxu0 0
    %1238 = vmatpush1.bf16.msra.mxu0 0
    %1239 = vmatprep.subr.bf16.mxu0 0
    %1240 = vmatpush1.bf16.msra.mxu0 0
    %1241 = vmatprep.subr.bf16.mxu0 0
    %1242 = vmatpush1.bf16.msra.mxu0 0
    %1243 = vmatprep.subr.bf16.mxu0 0
    %1244 = vmatpush1.bf16.msra.mxu0 0
    %1245 = vmatprep.subr.bf16.mxu0 0
    %1246 = vmatpush1.bf16.msra.mxu0 0
    %1247 = vmatprep.subr.bf16.mxu0 0
    %1248 = vmatpush1.bf16.msra.mxu0 0
    %1249 = vmatprep.subr.bf16.mxu0 0
    %1250 = vmatpush1.bf16.msra.mxu0 0
    %1251 = vmatprep.subr.bf16.mxu0 0
    %1252 = vmatpush1.bf16.msra.mxu0 0
    %1253 = vmatprep.mubr.bf16.mxu0 0
    %1254 = vmatmul.mubr.bf16.gmra.mrb[0].mxu0 %v1220
    %v1255 = vpop.f32.mrb[0].mxu0
    %v1256 = vadd.f32 0.0, %v1255
    %v1257 = vpop.f32.mrb[0].mxu0
    %v1258 = vadd.f32 0.0, %v1257
    %v1259 = vpop.f32.mrb[0].mxu0
    %v1260 = vadd.f32 0.0, %v1259
    %v1261 = vpop.f32.mrb[0].mxu0
    %v1262 = vadd.f32 0.0, %v1261
    %1263 = vdwg.mxu0
    %v1264 = vmul.f32 %v1256, 0.0078125
    %v1265 = vmul.f32 %v1258, 0.0078125
    %v1266 = vmul.f32 %v1260, 0.0078125
    %v1267 = vmul.f32 %v1262, 0.0078125
    %v1268 = vmul.f32 %v1171, 0.5
    %v1269 = vmul.f32 %v1172, 0.5
    %v1270 = vmul.f32 %v1173, 0.5
    %v1271 = vmul.f32 %v1174, 0.5
    %v1272 = vadd.f32 %v1264, %v1268
    %v1273 = vadd.f32 %v1265, %v1269
    %v1274 = vadd.f32 %v1266, %v1270
    %v1275 = vadd.f32 %v1267, %v1271
    %v1276 = vmul.f32 %v1171, %v1272
    %v1277 = vmul.f32 %v1172, %v1273
    %v1278 = vmul.f32 %v1173, %v1274
    %v1279 = vmul.f32 %v1174, %v1275
    %v1280 = vadd.f32 %v1276, %v1277
    %v1281 = vadd.f32 %v1280, %v1278
    %v1282 = vadd.f32 %v1281, %v1279
    %1283 = vadd.xlane.f32.xlu0 %v1282
    %v1284 = vpop.xlane.xlu0 %1283
    %v1285 = vrot.slane %v1284, 4
    %v1286 = vadd.f32 %v1284, %v1285
    %v1287 = vrot.slane %v1286, 2
    %v1288 = vadd.f32 %v1286, %v1287
    %v1289 = vrot.slane %v1288, 1
    %v1290 = vadd.f32 %v1288, %v1289
    %s1291 = vtos %v1290
    %v1292 = vstv %s1291
    %v1293 = vrcp.pop %v1292
    %v1294 = vmul.f32 %v1175, %v1293
    %v1295 = vsel %vm1176, %v1294, 0.0
    %v1296 = vmul.f32 %v1295, %v1171
    %v1297 = vmul.f32 %v1295, %v1172
    %v1298 = vmul.f32 %v1295, %v1173
    %v1299 = vmul.f32 %v1295, %v1174
    %v1300 = vadd.f32 %v1135, %v1296
    %v1301 = vadd.f32 %v1136, %v1297
    %v1302 = vadd.f32 %v1137, %v1298
    %v1303 = vadd.f32 %v1138, %v1299
    %v1304 = vmul.f32 %v1295, %v1272
    %v1305 = vmul.f32 %v1295, %v1273
    %v1306 = vmul.f32 %v1295, %v1274
    %v1307 = vmul.f32 %v1295, %v1275
    %v1308 = vsub.f32 %v1143, %v1304
    %v1309 = vsub.f32 %v1144, %v1305
    %v1310 = vsub.f32 %v1145, %v1306
    %v1311 = vsub.f32 %v1146, %v1307
    %v1312 = vmul.f32 %v1308, %v1308
    %v1313 = vmul.f32 %v1309, %v1309
    %v1314 = vmul.f32 %v1310, %v1310
    %v1315 = vmul.f32 %v1311, %v1311
    %v1316 = vadd.f32 %v1312, %v1313
    %v1317 = vadd.f32 %v1316, %v1314
    %v1318 = vadd.f32 %v1317, %v1315
    %1319 = vadd.xlane.f32.xlu0 %v1318
    %v1320 = vpop.xlane.xlu0 %1319
    %v1321 = vrot.slane %v1320, 4
    %v1322 = vadd.f32 %v1320, %v1321
    %v1323 = vrot.slane %v1322, 2
    %v1324 = vadd.f32 %v1322, %v1323
    %v1325 = vrot.slane %v1324, 1
    %v1326 = vadd.f32 %v1324, %v1325
    %s1327 = vtos %v1326
    %v1328 = vstv %s1327
    %v1329 = vrcp.pop %v1175
    %v1330 = vmul.f32 %v1328, %v1329
    %v1331 = vsel %vm1176, %v1330, 0.0
    %v1332 = vmul.f32 %v1331, %v1171
    %v1333 = vmul.f32 %v1331, %v1172
    %v1334 = vmul.f32 %v1331, %v1173
    %v1335 = vmul.f32 %v1331, %v1174
    %v1336 = vadd.f32 %v1308, %v1332
    %v1337 = vadd.f32 %v1309, %v1333
    %v1338 = vadd.f32 %v1310, %v1334
    %v1339 = vadd.f32 %v1311, %v1335
    %v1340 = vsel %vm1176, %v1328, %v1175
    %vm1341 = vcmp.gt.f32.partialorder %v1340, 1e-10
    %v1342 = vpack.c.bf16 %v1338, %v1336
    %v1343 = vpack.c.bf16 %v1339, %v1337
    %1344 = vmatprep.subr.bf16.mxu0 %v158
    %1345 = vmatpush1.bf16.xpose.msra.mxu0 %v157
    %1346 = vmatprep.subr.bf16.mxu0 %v160
    %1347 = vmatpush1.bf16.xpose.msra.mxu0 %v159
    %1348 = vmatprep.subr.bf16.mxu0 %v162
    %1349 = vmatpush1.bf16.xpose.msra.mxu0 %v161
    %1350 = vmatprep.subr.bf16.mxu0 %v164
    %1351 = vmatpush1.bf16.xpose.msra.mxu0 %v163
    %1352 = vmatprep.subr.bf16.mxu0 %v166
    %1353 = vmatpush1.bf16.xpose.msra.mxu0 %v165
    %1354 = vmatprep.subr.bf16.mxu0 %v168
    %1355 = vmatpush1.bf16.xpose.msra.mxu0 %v167
    %1356 = vmatprep.subr.bf16.mxu0 %v170
    %1357 = vmatpush1.bf16.xpose.msra.mxu0 %v169
    %1358 = vmatprep.subr.bf16.mxu0 %v172
    %1359 = vmatpush1.bf16.xpose.msra.mxu0 %v171
    %1360 = vmatprep.subr.bf16.mxu0 0
    %1361 = vmatpush1.bf16.xpose.msra.mxu0 0
    %1362 = vmatprep.subr.bf16.mxu0 0
    %1363 = vmatpush1.bf16.xpose.msra.mxu0 0
    %1364 = vmatprep.subr.bf16.mxu0 0
    %1365 = vmatpush1.bf16.xpose.msra.mxu0 0
    %1366 = vmatprep.subr.bf16.mxu0 0
    %1367 = vmatpush1.bf16.xpose.msra.mxu0 0
    %1368 = vmatprep.subr.bf16.mxu0 0
    %1369 = vmatpush1.bf16.xpose.msra.mxu0 0
    %1370 = vmatprep.subr.bf16.mxu0 0
    %1371 = vmatpush1.bf16.xpose.msra.mxu0 0
    %1372 = vmatprep.subr.bf16.mxu0 0
    %1373 = vmatpush1.bf16.xpose.msra.mxu0 0
    %1374 = vmatprep.subr.bf16.mxu0 0
    %1375 = vmatpush1.bf16.xpose.msra.mxu0 0
    %1376 = vmatprep.mubr.bf16.mxu0 %v1343
    %1377 = vmatmul.mubr.bf16.gmra.mrb[0].mxu0 %v1342
    %v1378 = vpop.f32.mrb[0].mxu0
    %v1379 = vadd.f32 0.0, %v1378
    %v1380 = vpop.f32.mrb[0].mxu0
    %v1381 = vpop.f32.mrb[0].mxu0
    %v1382 = vadd.f32 0.0, %v1381
    %v1383 = vpop.f32.mrb[0].mxu0
    %1384 = vdwg.mxu0
    %v1385 = vpack.c.bf16 %v1382, %v1379
    %1386 = vmatprep.subr.bf16.mxu0 %v158
    %1387 = vmatpush1.bf16.msra.mxu0 %v157
    %1388 = vmatprep.subr.bf16.mxu0 %v160
    %1389 = vmatpush1.bf16.msra.mxu0 %v159
    %1390 = vmatprep.subr.bf16.mxu0 %v162
    %1391 = vmatpush1.bf16.msra.mxu0 %v161
    %1392 = vmatprep.subr.bf16.mxu0 %v164
    %1393 = vmatpush1.bf16.msra.mxu0 %v163
    %1394 = vmatprep.subr.bf16.mxu0 %v166
    %1395 = vmatpush1.bf16.msra.mxu0 %v165
    %1396 = vmatprep.subr.bf16.mxu0 %v168
    %1397 = vmatpush1.bf16.msra.mxu0 %v167
    %1398 = vmatprep.subr.bf16.mxu0 %v170
    %1399 = vmatpush1.bf16.msra.mxu0 %v169
    %1400 = vmatprep.subr.bf16.mxu0 %v172
    %1401 = vmatpush1.bf16.msra.mxu0 %v171
    %1402 = vmatprep.subr.bf16.mxu0 0
    %1403 = vmatpush1.bf16.msra.mxu0 0
    %1404 = vmatprep.subr.bf16.mxu0 0
    %1405 = vmatpush1.bf16.msra.mxu0 0
    %1406 = vmatprep.subr.bf16.mxu0 0
    %1407 = vmatpush1.bf16.msra.mxu0 0
    %1408 = vmatprep.subr.bf16.mxu0 0
    %1409 = vmatpush1.bf16.msra.mxu0 0
    %1410 = vmatprep.subr.bf16.mxu0 0
    %1411 = vmatpush1.bf16.msra.mxu0 0
    %1412 = vmatprep.subr.bf16.mxu0 0
    %1413 = vmatpush1.bf16.msra.mxu0 0
    %1414 = vmatprep.subr.bf16.mxu0 0
    %1415 = vmatpush1.bf16.msra.mxu0 0
    %1416 = vmatprep.subr.bf16.mxu0 0
    %1417 = vmatpush1.bf16.msra.mxu0 0
    %1418 = vmatprep.mubr.bf16.mxu0 0
    %1419 = vmatmul.mubr.bf16.gmra.mrb[0].mxu0 %v1385
    %v1420 = vpop.f32.mrb[0].mxu0
    %v1421 = vadd.f32 0.0, %v1420
    %v1422 = vpop.f32.mrb[0].mxu0
    %v1423 = vadd.f32 0.0, %v1422
    %v1424 = vpop.f32.mrb[0].mxu0
    %v1425 = vadd.f32 0.0, %v1424
    %v1426 = vpop.f32.mrb[0].mxu0
    %v1427 = vadd.f32 0.0, %v1426
    %1428 = vdwg.mxu0
    %v1429 = vmul.f32 %v1421, 0.0078125
    %v1430 = vmul.f32 %v1423, 0.0078125
    %v1431 = vmul.f32 %v1425, 0.0078125
    %v1432 = vmul.f32 %v1427, 0.0078125
    %v1433 = vmul.f32 %v1336, 0.5
    %v1434 = vmul.f32 %v1337, 0.5
    %v1435 = vmul.f32 %v1338, 0.5
    %v1436 = vmul.f32 %v1339, 0.5
    %v1437 = vadd.f32 %v1429, %v1433
    %v1438 = vadd.f32 %v1430, %v1434
    %v1439 = vadd.f32 %v1431, %v1435
    %v1440 = vadd.f32 %v1432, %v1436
    %v1441 = vmul.f32 %v1336, %v1437
    %v1442 = vmul.f32 %v1337, %v1438
    %v1443 = vmul.f32 %v1338, %v1439
    %v1444 = vmul.f32 %v1339, %v1440
    %v1445 = vadd.f32 %v1441, %v1442
    %v1446 = vadd.f32 %v1445, %v1443
    %v1447 = vadd.f32 %v1446, %v1444
    %1448 = vadd.xlane.f32.xlu0 %v1447
    %v1449 = vpop.xlane.xlu0 %1448
    %v1450 = vrot.slane %v1449, 4
    %v1451 = vadd.f32 %v1449, %v1450
    %v1452 = vrot.slane %v1451, 2
    %v1453 = vadd.f32 %v1451, %v1452
    %v1454 = vrot.slane %v1453, 1
    %v1455 = vadd.f32 %v1453, %v1454
    %s1456 = vtos %v1455
    %v1457 = vstv %s1456
    %v1458 = vrcp.pop %v1457
    %v1459 = vmul.f32 %v1340, %v1458
    %v1460 = vsel %vm1341, %v1459, 0.0
    %v1461 = vmul.f32 %v1460, %v1336
    %v1462 = vmul.f32 %v1460, %v1337
    %v1463 = vmul.f32 %v1460, %v1338
    %v1464 = vmul.f32 %v1460, %v1339
    %v1465 = vadd.f32 %v1300, %v1461
    %v1466 = vadd.f32 %v1301, %v1462
    %v1467 = vadd.f32 %v1302, %v1463
    %v1468 = vadd.f32 %v1303, %v1464
    %v1469 = vmul.f32 %v1460, %v1437
    %v1470 = vmul.f32 %v1460, %v1438
    %v1471 = vmul.f32 %v1460, %v1439
    %v1472 = vmul.f32 %v1460, %v1440
    %v1473 = vsub.f32 %v1308, %v1469
    %v1474 = vsub.f32 %v1309, %v1470
    %v1475 = vsub.f32 %v1310, %v1471
    %v1476 = vsub.f32 %v1311, %v1472
    %v1477 = vmul.f32 %v1473, %v1473
    %v1478 = vmul.f32 %v1474, %v1474
    %v1479 = vmul.f32 %v1475, %v1475
    %v1480 = vmul.f32 %v1476, %v1476
    %v1481 = vadd.f32 %v1477, %v1478
    %v1482 = vadd.f32 %v1481, %v1479
    %v1483 = vadd.f32 %v1482, %v1480
    %1484 = vadd.xlane.f32.xlu0 %v1483
    %v1485 = vpop.xlane.xlu0 %1484
    %v1486 = vrot.slane %v1485, 4
    %v1487 = vadd.f32 %v1485, %v1486
    %v1488 = vrot.slane %v1487, 2
    %v1489 = vadd.f32 %v1487, %v1488
    %v1490 = vrot.slane %v1489, 1
    %v1491 = vadd.f32 %v1489, %v1490
    %s1492 = vtos %v1491
    %v1493 = vstv %s1492
    %v1494 = vrcp.pop %v1340
    %v1495 = vmul.f32 %v1493, %v1494
    %v1496 = vsel %vm1341, %v1495, 0.0
    %v1497 = vmul.f32 %v1496, %v1336
    %v1498 = vmul.f32 %v1496, %v1337
    %v1499 = vmul.f32 %v1496, %v1338
    %v1500 = vmul.f32 %v1496, %v1339
    %v1501 = vadd.f32 %v1473, %v1497
    %v1502 = vadd.f32 %v1474, %v1498
    %v1503 = vadd.f32 %v1475, %v1499
    %v1504 = vadd.f32 %v1476, %v1500
    %v1505 = vsel %vm1341, %v1493, %v1340
    %vm1506 = vcmp.gt.f32.partialorder %v1505, 1e-10
    %v1507 = vpack.c.bf16 %v1503, %v1501
    %v1508 = vpack.c.bf16 %v1504, %v1502
    %1509 = vmatprep.subr.bf16.mxu0 %v158
    %1510 = vmatpush1.bf16.xpose.msra.mxu0 %v157
    %1511 = vmatprep.subr.bf16.mxu0 %v160
    %1512 = vmatpush1.bf16.xpose.msra.mxu0 %v159
    %1513 = vmatprep.subr.bf16.mxu0 %v162
    %1514 = vmatpush1.bf16.xpose.msra.mxu0 %v161
    %1515 = vmatprep.subr.bf16.mxu0 %v164
    %1516 = vmatpush1.bf16.xpose.msra.mxu0 %v163
    %1517 = vmatprep.subr.bf16.mxu0 %v166
    %1518 = vmatpush1.bf16.xpose.msra.mxu0 %v165
    %1519 = vmatprep.subr.bf16.mxu0 %v168
    %1520 = vmatpush1.bf16.xpose.msra.mxu0 %v167
    %1521 = vmatprep.subr.bf16.mxu0 %v170
    %1522 = vmatpush1.bf16.xpose.msra.mxu0 %v169
    %1523 = vmatprep.subr.bf16.mxu0 %v172
    %1524 = vmatpush1.bf16.xpose.msra.mxu0 %v171
    %1525 = vmatprep.subr.bf16.mxu0 0
    %1526 = vmatpush1.bf16.xpose.msra.mxu0 0
    %1527 = vmatprep.subr.bf16.mxu0 0
    %1528 = vmatpush1.bf16.xpose.msra.mxu0 0
    %1529 = vmatprep.subr.bf16.mxu0 0
    %1530 = vmatpush1.bf16.xpose.msra.mxu0 0
    %1531 = vmatprep.subr.bf16.mxu0 0
    %1532 = vmatpush1.bf16.xpose.msra.mxu0 0
    %1533 = vmatprep.subr.bf16.mxu0 0
    %1534 = vmatpush1.bf16.xpose.msra.mxu0 0
    %1535 = vmatprep.subr.bf16.mxu0 0
    %1536 = vmatpush1.bf16.xpose.msra.mxu0 0
    %1537 = vmatprep.subr.bf16.mxu0 0
    %1538 = vmatpush1.bf16.xpose.msra.mxu0 0
    %1539 = vmatprep.subr.bf16.mxu0 0
    %1540 = vmatpush1.bf16.xpose.msra.mxu0 0
    %1541 = vmatprep.mubr.bf16.mxu0 %v1508
    %1542 = vmatmul.mubr.bf16.gmra.mrb[0].mxu0 %v1507
    %v1543 = vpop.f32.mrb[0].mxu0
    %v1544 = vadd.f32 0.0, %v1543
    %v1545 = vpop.f32.mrb[0].mxu0
    %v1546 = vpop.f32.mrb[0].mxu0
    %v1547 = vadd.f32 0.0, %v1546
    %v1548 = vpop.f32.mrb[0].mxu0
    %1549 = vdwg.mxu0
    %v1550 = vpack.c.bf16 %v1547, %v1544
    %1551 = vmatprep.subr.bf16.mxu0 %v158
    %1552 = vmatpush1.bf16.msra.mxu0 %v157
    %1553 = vmatprep.subr.bf16.mxu0 %v160
    %1554 = vmatpush1.bf16.msra.mxu0 %v159
    %1555 = vmatprep.subr.bf16.mxu0 %v162
    %1556 = vmatpush1.bf16.msra.mxu0 %v161
    %1557 = vmatprep.subr.bf16.mxu0 %v164
    %1558 = vmatpush1.bf16.msra.mxu0 %v163
    %1559 = vmatprep.subr.bf16.mxu0 %v166
    %1560 = vmatpush1.bf16.msra.mxu0 %v165
    %1561 = vmatprep.subr.bf16.mxu0 %v168
    %1562 = vmatpush1.bf16.msra.mxu0 %v167
    %1563 = vmatprep.subr.bf16.mxu0 %v170
    %1564 = vmatpush1.bf16.msra.mxu0 %v169
    %1565 = vmatprep.subr.bf16.mxu0 %v172
    %1566 = vmatpush1.bf16.msra.mxu0 %v171
    %1567 = vmatprep.subr.bf16.mxu0 0
    %1568 = vmatpush1.bf16.msra.mxu0 0
    %1569 = vmatprep.subr.bf16.mxu0 0
    %1570 = vmatpush1.bf16.msra.mxu0 0
    %1571 = vmatprep.subr.bf16.mxu0 0
    %1572 = vmatpush1.bf16.msra.mxu0 0
    %1573 = vmatprep.subr.bf16.mxu0 0
    %1574 = vmatpush1.bf16.msra.mxu0 0
    %1575 = vmatprep.subr.bf16.mxu0 0
    %1576 = vmatpush1.bf16.msra.mxu0 0
    %1577 = vmatprep.subr.bf16.mxu0 0
    %1578 = vmatpush1.bf16.msra.mxu0 0
    %1579 = vmatprep.subr.bf16.mxu0 0
    %1580 = vmatpush1.bf16.msra.mxu0 0
    %1581 = vmatprep.subr.bf16.mxu0 0
    %1582 = vmatpush1.bf16.msra.mxu0 0
    %1583 = vmatprep.mubr.bf16.mxu0 0
    %1584 = vmatmul.mubr.bf16.gmra.mrb[0].mxu0 %v1550
    %v1585 = vpop.f32.mrb[0].mxu0
    %v1586 = vadd.f32 0.0, %v1585
    %v1587 = vpop.f32.mrb[0].mxu0
    %v1588 = vadd.f32 0.0, %v1587
    %v1589 = vpop.f32.mrb[0].mxu0
    %v1590 = vadd.f32 0.0, %v1589
    %v1591 = vpop.f32.mrb[0].mxu0
    %v1592 = vadd.f32 0.0, %v1591
    %1593 = vdwg.mxu0
    %v1594 = vmul.f32 %v1586, 0.0078125
    %v1595 = vmul.f32 %v1588, 0.0078125
    %v1596 = vmul.f32 %v1590, 0.0078125
    %v1597 = vmul.f32 %v1592, 0.0078125
    %v1598 = vmul.f32 %v1501, 0.5
    %v1599 = vmul.f32 %v1502, 0.5
    %v1600 = vmul.f32 %v1503, 0.5
    %v1601 = vmul.f32 %v1504, 0.5
    %v1602 = vadd.f32 %v1594, %v1598
    %v1603 = vadd.f32 %v1595, %v1599
    %v1604 = vadd.f32 %v1596, %v1600
    %v1605 = vadd.f32 %v1597, %v1601
    %v1606 = vmul.f32 %v1501, %v1602
    %v1607 = vmul.f32 %v1502, %v1603
    %v1608 = vmul.f32 %v1503, %v1604
    %v1609 = vmul.f32 %v1504, %v1605
    %v1610 = vadd.f32 %v1606, %v1607
    %v1611 = vadd.f32 %v1610, %v1608
    %v1612 = vadd.f32 %v1611, %v1609
    %1613 = vadd.xlane.f32.xlu0 %v1612
    %v1614 = vpop.xlane.xlu0 %1613
    %v1615 = vrot.slane %v1614, 4
    %v1616 = vadd.f32 %v1614, %v1615
    %v1617 = vrot.slane %v1616, 2
    %v1618 = vadd.f32 %v1616, %v1617
    %v1619 = vrot.slane %v1618, 1
    %v1620 = vadd.f32 %v1618, %v1619
    %s1621 = vtos %v1620
    %v1622 = vstv %s1621
    %v1623 = vrcp.pop %v1622
    %v1624 = vmul.f32 %v1505, %v1623
    %v1625 = vsel %vm1506, %v1624, 0.0
    %v1626 = vmul.f32 %v1625, %v1501
    %v1627 = vmul.f32 %v1625, %v1502
    %v1628 = vmul.f32 %v1625, %v1503
    %v1629 = vmul.f32 %v1625, %v1504
    %v1630 = vadd.f32 %v1465, %v1626
    %v1631 = vadd.f32 %v1466, %v1627
    %v1632 = vadd.f32 %v1467, %v1628
    %v1633 = vadd.f32 %v1468, %v1629
    %v1634 = vmul.f32 %v1625, %v1602
    %v1635 = vmul.f32 %v1625, %v1603
    %v1636 = vmul.f32 %v1625, %v1604
    %v1637 = vmul.f32 %v1625, %v1605
    %v1638 = vsub.f32 %v1473, %v1634
    %v1639 = vsub.f32 %v1474, %v1635
    %v1640 = vsub.f32 %v1475, %v1636
    %v1641 = vsub.f32 %v1476, %v1637
    %v1642 = vmul.f32 %v1638, %v1638
    %v1643 = vmul.f32 %v1639, %v1639
    %v1644 = vmul.f32 %v1640, %v1640
    %v1645 = vmul.f32 %v1641, %v1641
    %v1646 = vadd.f32 %v1642, %v1643
    %v1647 = vadd.f32 %v1646, %v1644
    %v1648 = vadd.f32 %v1647, %v1645
    %1649 = vadd.xlane.f32.xlu0 %v1648
    %v1650 = vpop.xlane.xlu0 %1649
    %v1651 = vrot.slane %v1650, 4
    %v1652 = vadd.f32 %v1650, %v1651
    %v1653 = vrot.slane %v1652, 2
    %v1654 = vadd.f32 %v1652, %v1653
    %v1655 = vrot.slane %v1654, 1
    %v1656 = vadd.f32 %v1654, %v1655
    %s1657 = vtos %v1656
    %v1658 = vstv %s1657
    %v1659 = vrcp.pop %v1505
    %v1660 = vmul.f32 %v1658, %v1659
    %v1661 = vsel %vm1506, %v1660, 0.0
    %v1662 = vmul.f32 %v1661, %v1501
    %v1663 = vmul.f32 %v1661, %v1502
    %v1664 = vmul.f32 %v1661, %v1503
    %v1665 = vmul.f32 %v1661, %v1504
    %v1666 = vadd.f32 %v1638, %v1662
    %v1667 = vadd.f32 %v1639, %v1663
    %v1668 = vadd.f32 %v1640, %v1664
    %v1669 = vadd.f32 %v1641, %v1665
    %v1670 = vsel %vm1506, %v1658, %v1505
    %vm1671 = vcmp.gt.f32.partialorder %v1670, 1e-10
    %v1672 = vpack.c.bf16 %v1668, %v1666
    %v1673 = vpack.c.bf16 %v1669, %v1667
    %1674 = vmatprep.subr.bf16.mxu0 %v158
    %1675 = vmatpush1.bf16.xpose.msra.mxu0 %v157
    %1676 = vmatprep.subr.bf16.mxu0 %v160
    %1677 = vmatpush1.bf16.xpose.msra.mxu0 %v159
    %1678 = vmatprep.subr.bf16.mxu0 %v162
    %1679 = vmatpush1.bf16.xpose.msra.mxu0 %v161
    %1680 = vmatprep.subr.bf16.mxu0 %v164
    %1681 = vmatpush1.bf16.xpose.msra.mxu0 %v163
    %1682 = vmatprep.subr.bf16.mxu0 %v166
    %1683 = vmatpush1.bf16.xpose.msra.mxu0 %v165
    %1684 = vmatprep.subr.bf16.mxu0 %v168
    %1685 = vmatpush1.bf16.xpose.msra.mxu0 %v167
    %1686 = vmatprep.subr.bf16.mxu0 %v170
    %1687 = vmatpush1.bf16.xpose.msra.mxu0 %v169
    %1688 = vmatprep.subr.bf16.mxu0 %v172
    %1689 = vmatpush1.bf16.xpose.msra.mxu0 %v171
    %1690 = vmatprep.subr.bf16.mxu0 0
    %1691 = vmatpush1.bf16.xpose.msra.mxu0 0
    %1692 = vmatprep.subr.bf16.mxu0 0
    %1693 = vmatpush1.bf16.xpose.msra.mxu0 0
    %1694 = vmatprep.subr.bf16.mxu0 0
    %1695 = vmatpush1.bf16.xpose.msra.mxu0 0
    %1696 = vmatprep.subr.bf16.mxu0 0
    %1697 = vmatpush1.bf16.xpose.msra.mxu0 0
    %1698 = vmatprep.subr.bf16.mxu0 0
    %1699 = vmatpush1.bf16.xpose.msra.mxu0 0
    %1700 = vmatprep.subr.bf16.mxu0 0
    %1701 = vmatpush1.bf16.xpose.msra.mxu0 0
    %1702 = vmatprep.subr.bf16.mxu0 0
    %1703 = vmatpush1.bf16.xpose.msra.mxu0 0
    %1704 = vmatprep.subr.bf16.mxu0 0
    %1705 = vmatpush1.bf16.xpose.msra.mxu0 0
    %1706 = vmatprep.mubr.bf16.mxu0 %v1673
    %1707 = vmatmul.mubr.bf16.gmra.mrb[0].mxu0 %v1672
    %v1708 = vpop.f32.mrb[0].mxu0
    %v1709 = vadd.f32 0.0, %v1708
    %v1710 = vpop.f32.mrb[0].mxu0
    %v1711 = vpop.f32.mrb[0].mxu0
    %v1712 = vadd.f32 0.0, %v1711
    %v1713 = vpop.f32.mrb[0].mxu0
    %1714 = vdwg.mxu0
    %v1715 = vpack.c.bf16 %v1712, %v1709
    %1716 = vmatprep.subr.bf16.mxu0 %v158
    %1717 = vmatpush1.bf16.msra.mxu0 %v157
    %1718 = vmatprep.subr.bf16.mxu0 %v160
    %1719 = vmatpush1.bf16.msra.mxu0 %v159
    %1720 = vmatprep.subr.bf16.mxu0 %v162
    %1721 = vmatpush1.bf16.msra.mxu0 %v161
    %1722 = vmatprep.subr.bf16.mxu0 %v164
    %1723 = vmatpush1.bf16.msra.mxu0 %v163
    %1724 = vmatprep.subr.bf16.mxu0 %v166
    %1725 = vmatpush1.bf16.msra.mxu0 %v165
    %1726 = vmatprep.subr.bf16.mxu0 %v168
    %1727 = vmatpush1.bf16.msra.mxu0 %v167
    %1728 = vmatprep.subr.bf16.mxu0 %v170
    %1729 = vmatpush1.bf16.msra.mxu0 %v169
    %1730 = vmatprep.subr.bf16.mxu0 %v172
    %1731 = vmatpush1.bf16.msra.mxu0 %v171
    %1732 = vmatprep.subr.bf16.mxu0 0
    %1733 = vmatpush1.bf16.msra.mxu0 0
    %1734 = vmatprep.subr.bf16.mxu0 0
    %1735 = vmatpush1.bf16.msra.mxu0 0
    %1736 = vmatprep.subr.bf16.mxu0 0
    %1737 = vmatpush1.bf16.msra.mxu0 0
    %1738 = vmatprep.subr.bf16.mxu0 0
    %1739 = vmatpush1.bf16.msra.mxu0 0
    %1740 = vmatprep.subr.bf16.mxu0 0
    %1741 = vmatpush1.bf16.msra.mxu0 0
    %1742 = vmatprep.subr.bf16.mxu0 0
    %1743 = vmatpush1.bf16.msra.mxu0 0
    %1744 = vmatprep.subr.bf16.mxu0 0
    %1745 = vmatpush1.bf16.msra.mxu0 0
    %1746 = vmatprep.subr.bf16.mxu0 0
    %1747 = vmatpush1.bf16.msra.mxu0 0
    %1748 = vmatprep.mubr.bf16.mxu0 0
    %1749 = vmatmul.mubr.bf16.gmra.mrb[0].mxu0 %v1715
    %v1750 = vpop.f32.mrb[0].mxu0
    %v1751 = vadd.f32 0.0, %v1750
    %v1752 = vpop.f32.mrb[0].mxu0
    %v1753 = vadd.f32 0.0, %v1752
    %v1754 = vpop.f32.mrb[0].mxu0
    %v1755 = vadd.f32 0.0, %v1754
    %v1756 = vpop.f32.mrb[0].mxu0
    %v1757 = vadd.f32 0.0, %v1756
    %1758 = vdwg.mxu0
    %v1759 = vmul.f32 %v1751, 0.0078125
    %v1760 = vmul.f32 %v1753, 0.0078125
    %v1761 = vmul.f32 %v1755, 0.0078125
    %v1762 = vmul.f32 %v1757, 0.0078125
    %v1763 = vmul.f32 %v1666, 0.5
    %v1764 = vmul.f32 %v1667, 0.5
    %v1765 = vmul.f32 %v1668, 0.5
    %v1766 = vmul.f32 %v1669, 0.5
    %v1767 = vadd.f32 %v1759, %v1763
    %v1768 = vadd.f32 %v1760, %v1764
    %v1769 = vadd.f32 %v1761, %v1765
    %v1770 = vadd.f32 %v1762, %v1766
    %v1771 = vmul.f32 %v1666, %v1767
    %v1772 = vmul.f32 %v1667, %v1768
    %v1773 = vmul.f32 %v1668, %v1769
    %v1774 = vmul.f32 %v1669, %v1770
    %v1775 = vadd.f32 %v1771, %v1772
    %v1776 = vadd.f32 %v1775, %v1773
    %v1777 = vadd.f32 %v1776, %v1774
    %1778 = vadd.xlane.f32.xlu0 %v1777
    %v1779 = vpop.xlane.xlu0 %1778
    %v1780 = vrot.slane %v1779, 4
    %v1781 = vadd.f32 %v1779, %v1780
    %v1782 = vrot.slane %v1781, 2
    %v1783 = vadd.f32 %v1781, %v1782
    %v1784 = vrot.slane %v1783, 1
    %v1785 = vadd.f32 %v1783, %v1784
    %s1786 = vtos %v1785
    %v1787 = vstv %s1786
    %v1788 = vrcp.pop %v1787
    %v1789 = vmul.f32 %v1670, %v1788
    %v1790 = vsel %vm1671, %v1789, 0.0
    %v1791 = vmul.f32 %v1790, %v1666
    %v1792 = vmul.f32 %v1790, %v1667
    %v1793 = vmul.f32 %v1790, %v1668
    %v1794 = vmul.f32 %v1790, %v1669
    %v1795 = vadd.f32 %v1630, %v1791
    %v1796 = vadd.f32 %v1631, %v1792
    %v1797 = vadd.f32 %v1632, %v1793
    %v1798 = vadd.f32 %v1633, %v1794
    %1799 = vst [vmem:[#allocation8] sm:$0xff] %v1795
    %1800 = vst [vmem:[#allocation8 + $0x8] sm:$0xff] %v1796
    %1801 = vst [vmem:[#allocation8 + $0x10] sm:$0xff] %v1797
    %1802 = vst [vmem:[#allocation8 + $0x18] sm:$0xff] %v1798
    // Predicated region
    $region26: #{tpu_custom_call.1} parent=1 // pred_check
      _
    $region27: #{tpu_custom_call.1} parent=1 // pred_check_branch
      %1804 = sbr.rel (0) target = $region29
    $region28: #{tpu_custom_call.1} parent=1 // pred_region
      %s1806 = ssub.s32 512, 512
      %1807 = vsyncadd [#allocation4], %s1806
      %s1808 = sshll.u32 [#allocation8], 4
      %s1809 = int_to_ptr.vmem [resolvable:$true] %s1808
      %1814 = dma.vmem_to_hbm [thread:$0]  %s1809, 512, %s3, [#allocation4], 256, 256, 16
    $region29: #{tpu_custom_call.1} parent=1 // pred_fallthru
      _
    // Predicated region
    $region30: #{tpu_custom_call.1} parent=1 // pred_check
      _
    $region31: #{tpu_custom_call.1} parent=1 // pred_check_branch
      %1816 = sbr.rel (0) target = $region33
    $region32: #{tpu_custom_call.1} parent=1 // pred_region
      %1817 = dma.done [#allocation4], 512
    $region33: #{tpu_custom_call.1} parent=1 // pred_fallthru
      _
    %1818 = vsyncpa [#allocation3], 1
    %1819 = vsyncpa [#allocation6], 1
    %1820 = vsyncpa [#allocation4], 1

</llo_original>
